<compile_context>
chip_gen: v6e
topology: v6e:2x2x1
jax: 0.10.0
libtpu: 0.0.40
codegen_flags: <defaults>
</compile_context>

<pallas_src>
import jax
import jax.numpy as jnp
from jax.experimental import pallas as pl
from jax.experimental.pallas import tpu as pltpu


def _fused_kernel(w_ref, b_ref, x_ref, r_ref, o_ref):
    # w_ref: (tc, Cin)   BN-scale-folded 1x1-conv weight tile
    # b_ref: (tc, 1)     folded BN bias (per output channel)
    # x_ref: (Cin, HW)   activations, NCHW-native (resident across Cout tiles)
    # r_ref: (tc, HW)    residual tile (x292)
    # o_ref: (tc, HW)
    y = jnp.dot(w_ref[...], x_ref[...], preferred_element_type=jnp.float32)
    y = y + b_ref[...]          # (tc, 1) broadcasts over the HW lane dim
    y = y + r_ref[...]
    o_ref[...] = jnp.maximum(y, 0.0).astype(o_ref.dtype)


def _pick_cout_tile(cout, target=256):
    """Largest divisor of cout that is <= target and sublane-aligned (multiple of 8),
    falling back to the full extent (always a legal block)."""
    for t in range(min(target, cout), 0, -1):
        if cout % t == 0 and (t % 8 == 0 or t == cout):
            return t
    return cout


def conv_bn_add_relu(x298, x292, weight, gamma, beta, running_mean, running_var,
                     eps=1e-5, cout_tile=256):
    """x298: (N, Cin, H, W), x292: (N, Cout, H, W), weight: (Cout, Cin, 1, 1)."""
    N, Cin, H, W = x298.shape
    Cout = weight.shape[0]
    HW = H * W
    tc = _pick_cout_tile(Cout, cout_tile)

    # Fold eval-mode BN into the conv weight (per-output-channel scale) + bias.
    scale = gamma / jnp.sqrt(running_var + eps)                             # (Cout,)
    w_scaled = (weight.reshape(Cout, Cin) * scale[:, None]).astype(jnp.float32)
    bias = (beta - running_mean * scale).reshape(Cout, 1).astype(jnp.float32)

    # NCHW-native: only contiguous (free) reshapes, no transposes.
    x_flat = x298.reshape(N, Cin, HW).astype(jnp.float32)
    r_flat = x292.reshape(N, Cout, HW).astype(jnp.float32)

    flops = 2 * N * HW * Cin * Cout
    bytes_accessed = 4 * (N * Cin * HW + Cout * Cin + Cout
                          + 2 * N * Cout * HW)

    out_flat = pl.pallas_call(
        _fused_kernel,
        out_shape=jax.ShapeDtypeStruct((N, Cout, HW), jnp.float32),
        grid_spec=pltpu.PrefetchScalarGridSpec(
            num_scalar_prefetch=0,
            grid=(N, Cout // tc),
            in_specs=[
                pl.BlockSpec((tc, Cin), lambda b, j: (j, 0)),            # weight tile
                pl.BlockSpec((tc, 1), lambda b, j: (j, 0)),              # bias tile
                pl.BlockSpec((None, Cin, HW), lambda b, j: (b, 0, 0)),   # x (fetched once / batch)
                pl.BlockSpec((None, tc, HW), lambda b, j: (b, j, 0)),    # residual tile
            ],
            out_specs=pl.BlockSpec((None, tc, HW), lambda b, j: (b, j, 0)),
        ),
        compiler_params=pltpu.CompilerParams(
            dimension_semantics=("parallel", "parallel"),
        ),
        cost_estimate=pl.CostEstimate(
            flops=flops, transcendentals=0, bytes_accessed=bytes_accessed),
    )(w_scaled, bias, x_flat, r_flat)

    return out_flat.reshape(N, Cout, H, W)


def _reference(x298, x292, weight, gamma, beta, running_mean, running_var, eps=1e-5):
    w = weight.reshape(weight.shape[0], weight.shape[1])  # (Cout, Cin)
    y = jnp.einsum("nchw,oc->nohw", x298, w)
    scale = gamma / jnp.sqrt(running_var + eps)
    bias = beta - running_mean * scale
    y = y * scale[None, :, None, None] + bias[None, :, None, None]
    y = y + x292
    return jnp.maximum(y, 0.0)


if __name__ == "__main__":
    key = jax.random.PRNGKey(0)
    k1, k2, k3, k4, k5, k6, k7 = jax.random.split(key, 7)

    # Shapes implied by the module: Conv2d(256 -> 1024, 1x1), 28x28 feature map.
    N, Cin, Cout, H, W = 1, 256, 1024, 28, 28

    x298 = jax.random.normal(k1, (N, Cin, H, W), dtype=jnp.float32)
    x292 = jax.random.normal(k2, (N, Cout, H, W), dtype=jnp.float32)

    # Deterministic synthetic parameters.
    weight = jax.random.normal(k3, (Cout, Cin, 1, 1), dtype=jnp.float32) * 0.05
    gamma = 1.0 + 0.1 * jax.random.normal(k4, (Cout,), dtype=jnp.float32)
    beta = 0.1 * jax.random.normal(k5, (Cout,), dtype=jnp.float32)
    running_mean = 0.1 * jax.random.normal(k6, (Cout,), dtype=jnp.float32)
    running_var = jnp.abs(jax.random.normal(k7, (Cout,), dtype=jnp.float32)) + 0.5

    out = conv_bn_add_relu(x298, x292, weight, gamma, beta, running_mean, running_var)
    out = jax.block_until_ready(out)

    ref = _reference(x298, x292, weight, gamma, beta, running_mean, running_var)
    assert out.shape == (N, Cout, H, W)
    assert jnp.allclose(out, ref, atol=5e-3, rtol=5e-3), "mismatch vs reference"

    print("KERNEL_OK")
</pallas_src>

<mosaic_0001>
module attributes {stable_mosaic.version = 11 : i64} {
  func.func @_fused_kernel(%arg0: i32, %arg1: i32, %arg2: memref<256x256xf32, #tpu.memory_space<vmem>>, %arg3: memref<256x1xf32, #tpu.memory_space<vmem>>, %arg4: memref<1x256x784xf32, #tpu.memory_space<vmem>>, %arg5: memref<1x256x784xf32, #tpu.memory_space<vmem>>, %arg6: memref<1x256x784xf32, #tpu.memory_space<vmem>>) attributes {dimension_semantics = [#tpu.dimension_semantics<parallel>, #tpu.dimension_semantics<parallel>], iteration_bounds = array<i64: 1, 4>, scalar_prefetch = 0 : i64, scratch_operands = 0 : i64, tpu.core_type = #tpu.core_type<tc>, window_params = [{transform_indices = @transform_0, window_bounds = array<i64: 256, 256>}, {transform_indices = @transform_1, window_bounds = array<i64: 256, 1>}, {transform_indices = @transform_2, window_bounds = array<i64: 1, 256, 784>}, {transform_indices = @transform_3, window_bounds = array<i64: 1, 256, 784>}, {transform_indices = @transform_4, window_bounds = array<i64: 1, 256, 784>}]} {
    %c0 = arith.constant 0 : index
    %c0_0 = arith.constant 0 : index
    %0 = vector.load %arg2[%c0, %c0_0] : memref<256x256xf32, #tpu.memory_space<vmem>>, vector<256x256xf32>
    %c0_1 = arith.constant 0 : index
    %c0_2 = arith.constant 0 : index
    %c0_3 = arith.constant 0 : index
    %1 = vector.load %arg4[%c0_1, %c0_2, %c0_3] : memref<1x256x784xf32, #tpu.memory_space<vmem>>, vector<1x256x784xf32>
    %2 = vector.shape_cast %1 : vector<1x256x784xf32> to vector<256x784xf32>
    %cst = arith.constant dense<0.000000e+00> : vector<256x784xf32>
    %3 = tpu.matmul %0, %2, %cst {dimension_numbers = #tpu.dot_dimension_numbers<[1], [0], [0], [1], [0, 0, 1, 1], [], []>} : vector<256x256xf32>, vector<256x784xf32>, vector<256x784xf32> -> vector<256x784xf32>
    %c0_4 = arith.constant 0 : index
    %c0_5 = arith.constant 0 : index
    %4 = vector.load %arg3[%c0_4, %c0_5] : memref<256x1xf32, #tpu.memory_space<vmem>>, vector<256x1xf32>
    %5 = vector.broadcast %4 : vector<256x1xf32> to vector<256x784xf32>
    %6 = arith.addf %3, %5 : vector<256x784xf32>
    %c0_6 = arith.constant 0 : index
    %c0_7 = arith.constant 0 : index
    %c0_8 = arith.constant 0 : index
    %7 = vector.load %arg5[%c0_6, %c0_7, %c0_8] : memref<1x256x784xf32, #tpu.memory_space<vmem>>, vector<1x256x784xf32>
    %8 = vector.shape_cast %7 : vector<1x256x784xf32> to vector<256x784xf32>
    %9 = arith.addf %6, %8 : vector<256x784xf32>
    %cst_9 = arith.constant 0.000000e+00 : f32
    %10 = vector.broadcast %cst_9 : f32 to vector<256x784xf32>
    %11 = arith.maximumf %9, %10 : vector<256x784xf32>
    %c0_10 = arith.constant 0 : index
    %c0_11 = arith.constant 0 : index
    %c0_12 = arith.constant 0 : index
    %12 = vector.load %arg6[%c0_10, %c0_11, %c0_12] : memref<1x256x784xf32, #tpu.memory_space<vmem>>, vector<1x256x784xf32>
    %13 = vector.shape_cast %12 : vector<1x256x784xf32> to vector<256x784xf32>
    %14 = vector.shape_cast %11 : vector<256x784xf32> to vector<1x256x784xf32>
    tpu.vector_store %arg6[%c0_10, %c0_11, %c0_12], %14 {strides = array<i32>} : memref<1x256x784xf32, #tpu.memory_space<vmem>>, vector<1x256x784xf32>,
    return
  }
  func.func @transform_0(%arg0: i32, %arg1: i32) -> (i32, i32) {
    %c0_i32 = arith.constant 0 : i32
    %c0_i32_0 = arith.constant 0 : i32
    return %arg1, %c0_i32 : i32, i32
  }
  func.func @transform_1(%arg0: i32, %arg1: i32) -> (i32, i32) {
    %c0_i32 = arith.constant 0 : i32
    %c0_i32_0 = arith.constant 0 : i32
    return %arg1, %c0_i32 : i32, i32
  }
  func.func @transform_2(%arg0: i32, %arg1: i32) -> (i32, i32, i32) {
    %c0_i32 = arith.constant 0 : i32
    %c0_i32_0 = arith.constant 0 : i32
    %c0_i32_1 = arith.constant 0 : i32
    return %arg0, %c0_i32, %c0_i32_0 : i32, i32, i32
  }
  func.func @transform_3(%arg0: i32, %arg1: i32) -> (i32, i32, i32) {
    %c0_i32 = arith.constant 0 : i32
    %c0_i32_0 = arith.constant 0 : i32
    return %arg0, %arg1, %c0_i32 : i32, i32, i32
  }
  func.func @transform_4(%arg0: i32, %arg1: i32) -> (i32, i32, i32) {
    %c0_i32 = arith.constant 0 : i32
    %c0_i32_0 = arith.constant 0 : i32
    return %arg0, %arg1, %c0_i32 : i32, i32, i32
  }
}

</mosaic_0001>

<llo_original>
// kernel: tpu_custom_call.1
$region0: #{tpu_custom_call.1}
  #allocation0 [shape = 'u32[]', space=smem, size = 0x4, offset = 0x4, fixed_abs, tag = 'smem constant byte address 0x4 - core index']
  #allocation1 [shape = 'u32[144,128]{1,0:T(1,128)}', space=vmem, size = 0x12000, scoped, tag = 'internal scratch']
  %s0 = inlined_call_operand.vmem [shape: f32[1024,256], index: 0, kind: input, shape index: {}]
  %s1 = inlined_call_operand.vmem [shape: f32[1024,1], index: 1, kind: input, shape index: {}]
  %s2 = inlined_call_operand.vmem [shape: f32[1,256,784], index: 2, kind: input, shape index: {}]
  %s3 = inlined_call_operand.vmem [shape: f32[1,1024,784], index: 3, kind: input, shape index: {}]
  %s4 = inlined_call_operand.vmem [shape: f32[1,1024,784], index: 4, kind: output, shape index: {}]
  %s5 = sld [smem:[#allocation0]]
  $region49: #{tpu_custom_call.1} parent=0
    _
  %s7 = ssub.s32 1, %s5
  %s8 = scalar_select 0, %s7, %s5
  loop: start=0, step=1, limit=6
  $region2: #{tpu_custom_call.1} parent=0 // loop_pre_header
    _
  $region3: #{tpu_custom_call.1} parent=0 // loop_header
    %s10 = sphi 0, %s14
    %p11 = scmp.ge.s32.totalorder %s10, 6
    %s17 = sphi 0, %s29
    %s18 = sphi 0, %s25
    %s19 = sphi 0, %s17
    %s20 = sphi 0, %s18
    %s21 = sphi 0, %s19
    %s22 = sphi 0, %s20
    %s32 = sphi 0, %s34
    %s35 = sphi 0, %s32
    %s36 = sphi 0, %s35
    %s52 = sphi 0, %s36
    %s58 = sphi 0, %s60
    %s61 = sphi 0, %s58
    %s62 = sphi 0, %s61
    %s78 = sphi 0, %s62
    %s84 = sphi 0, %s86
    %s87 = sphi 0, %s84
    %s88 = sphi 0, %s87
    %s104 = sphi 0, %s88
    %s112 = sphi 0, %s114
    %s115 = sphi 0, %s112
    %s116 = sphi 0, %s115
    %s132 = sphi 0, %s116
    %s140 = sphi 0, %s142
    %s143 = sphi 0, %s140
    %s144 = sphi 0, %s143
    %s160 = sphi 0, %s144
  $region4: #{tpu_custom_call.1} parent=0 // loop_header_branch
    %13 = sbr.rel (%p11) target = $region8
  $region5: #{tpu_custom_call.1} parent=0 // loop_body
    %s15 = ssub.s32 %s10, 1
    %s16 = ssub.s32 %s10, 2
    %s23 = sadd.s32 1, %s18
    %p24 = scmp.ge.s32.totalorder %s23, 4
    %s25 = scalar_select %p24, 0, %s23
    %s26 = sadd.s32 1, %s17
    %s27 = scalar_select %p24, %s26, %s17
    %p28 = scmp.ge.s32.totalorder %s27, 1
    %s29 = scalar_select %p28, 0, %s27
    %s30 = ssub.s32 %s18, %s25
    %p31 = scmp.eq.s32.totalorder %s30, 0
    %s33 = sadd.s32 %s32, 1
    %s34 = scalar_select %p31, %s32, %s33
    %p37 = pneg %p31
    %p38 = scmp.eq.s32.totalorder %s10, 3
    %p39 = por %p37, %p38
    %p40 = scmp.ne.s32.totalorder %s32, %s35
    %p41 = scmp.eq.s32.totalorder %s10, 0
    %p42 = por %p40, %p41
    %p43 = scmp.ne.s32.totalorder %s32, %s35
    %p44 = scmp.eq.s32.totalorder %s15, 3
    %p45 = por %p43, %p44
    %p46 = scmp.ne.s32.totalorder %s35, %s36
    %p47 = scmp.eq.s32.totalorder %s15, 0
    %p48 = por %p46, %p47
    %p49 = scmp.ne.s32.totalorder %s35, %s36
    %p50 = scmp.eq.s32.totalorder %s16, 3
    %p51 = por %p49, %p50
    %p53 = scmp.ne.s32.totalorder %s36, %s52
    %p54 = scmp.eq.s32.totalorder %s16, 0
    %p55 = por %p53, %p54
    %s56 = ssub.s32 %s18, %s25
    %p57 = scmp.eq.s32.totalorder %s56, 0
    %s59 = sadd.s32 %s58, 1
    %s60 = scalar_select %p57, %s58, %s59
    %p63 = pneg %p57
    %p64 = scmp.eq.s32.totalorder %s10, 3
    %p65 = por %p63, %p64
    %p66 = scmp.ne.s32.totalorder %s58, %s61
    %p67 = scmp.eq.s32.totalorder %s10, 0
    %p68 = por %p66, %p67
    %p69 = scmp.ne.s32.totalorder %s58, %s61
    %p70 = scmp.eq.s32.totalorder %s15, 3
    %p71 = por %p69, %p70
    %p72 = scmp.ne.s32.totalorder %s61, %s62
    %p73 = scmp.eq.s32.totalorder %s15, 0
    %p74 = por %p72, %p73
    %p75 = scmp.ne.s32.totalorder %s61, %s62
    %p76 = scmp.eq.s32.totalorder %s16, 3
    %p77 = por %p75, %p76
    %p79 = scmp.ne.s32.totalorder %s62, %s78
    %p80 = scmp.eq.s32.totalorder %s16, 0
    %p81 = por %p79, %p80
    %s82 = ssub.s32 %s17, %s29
    %p83 = scmp.eq.s32.totalorder %s82, 0
    %s85 = sadd.s32 %s84, 1
    %s86 = scalar_select %p83, %s84, %s85
    %p89 = pneg %p83
    %p90 = scmp.eq.s32.totalorder %s10, 3
    %p91 = por %p89, %p90
    %p92 = scmp.ne.s32.totalorder %s84, %s87
    %p93 = scmp.eq.s32.totalorder %s10, 0
    %p94 = por %p92, %p93
    %p95 = scmp.ne.s32.totalorder %s84, %s87
    %p96 = scmp.eq.s32.totalorder %s15, 3
    %p97 = por %p95, %p96
    %p98 = scmp.ne.s32.totalorder %s87, %s88
    %p99 = scmp.eq.s32.totalorder %s15, 0
    %p100 = por %p98, %p99
    %p101 = scmp.ne.s32.totalorder %s87, %s88
    %p102 = scmp.eq.s32.totalorder %s16, 3
    %p103 = por %p101, %p102
    %p105 = scmp.ne.s32.totalorder %s88, %s104
    %p106 = scmp.eq.s32.totalorder %s16, 0
    %p107 = por %p105, %p106
    %s108 = ssub.s32 %s17, %s29
    %s109 = ssub.s32 %s18, %s25
    %s110 = sor.u32 %s108, %s109
    %p111 = scmp.eq.s32.totalorder %s110, 0
    %s113 = sadd.s32 %s112, 1
    %s114 = scalar_select %p111, %s112, %s113
    %p117 = pneg %p111
    %p118 = scmp.eq.s32.totalorder %s10, 3
    %p119 = por %p117, %p118
    %p120 = scmp.ne.s32.totalorder %s112, %s115
    %p121 = scmp.eq.s32.totalorder %s10, 0
    %p122 = por %p120, %p121
    %p123 = scmp.ne.s32.totalorder %s112, %s115
    %p124 = scmp.eq.s32.totalorder %s15, 3
    %p125 = por %p123, %p124
    %p126 = scmp.ne.s32.totalorder %s115, %s116
    %p127 = scmp.eq.s32.totalorder %s15, 0
    %p128 = por %p126, %p127
    %p129 = scmp.ne.s32.totalorder %s115, %s116
    %p130 = scmp.eq.s32.totalorder %s16, 3
    %p131 = por %p129, %p130
    %p133 = scmp.ne.s32.totalorder %s116, %s132
    %p134 = scmp.eq.s32.totalorder %s16, 0
    %p135 = por %p133, %p134
    %s136 = ssub.s32 %s17, %s29
    %s137 = ssub.s32 %s18, %s25
    %s138 = sor.u32 %s136, %s137
    %p139 = scmp.eq.s32.totalorder %s138, 0
    %s141 = sadd.s32 %s140, 1
    %s142 = scalar_select %p139, %s140, %s141
    %p145 = pneg %p139
    %p146 = scmp.eq.s32.totalorder %s10, 3
    %p147 = por %p145, %p146
    %p148 = scmp.ne.s32.totalorder %s140, %s143
    %p149 = scmp.eq.s32.totalorder %s10, 0
    %p150 = por %p148, %p149
    %p151 = scmp.ne.s32.totalorder %s140, %s143
    %p152 = scmp.eq.s32.totalorder %s15, 3
    %p153 = por %p151, %p152
    %p154 = scmp.ne.s32.totalorder %s143, %s144
    %p155 = scmp.eq.s32.totalorder %s15, 0
    %p156 = por %p154, %p155
    %p157 = scmp.ne.s32.totalorder %s143, %s144
    %p158 = scmp.eq.s32.totalorder %s16, 3
    %p159 = por %p157, %p158
    %p161 = scmp.ne.s32.totalorder %s144, %s160
    %p162 = scmp.eq.s32.totalorder %s16, 0
    %p163 = por %p161, %p162
    %p164 = scmp.le.s32.totalorder 1, %s10
    %p165 = scmp.lt.s32.totalorder %s10, 5
    %p166 = pnand %p164, %p165
    %p167 = pneg %p166
    // Predicated region
    $region9: #{tpu_custom_call.1} parent=5 // pred_check
      _
    $region10: #{tpu_custom_call.1} parent=5 // pred_check_branch
      %169 = sbr.rel (%p166) target = $region12
    $region11: #{tpu_custom_call.1} parent=5 // pred_region
      %s170 = ssub.s32 %s10, 1
      // Predicated region
      $region13: #{tpu_custom_call.1} parent=11 // pred_check
        %p171 = pneg %p100
      $region14: #{tpu_custom_call.1} parent=11 // pred_check_branch
        %173 = sbr.rel (%p171) target = $region16
      $region15: #{tpu_custom_call.1} parent=11 // pred_region
        %p174 = scmp.lt.s32.totalorder %s19, 0
        %s175 = scalar_select %p174, %s19, 0
        %s176 = smul.addr %s175, 224
        %s177 = smul.addr %s176, 8
        %s178 = scalar_lea.vmem %s2, %s177
      $region16: #{tpu_custom_call.1} parent=11 // pred_fallthru
        _
    $region12: #{tpu_custom_call.1} parent=5 // pred_fallthru
      _
    %p179 = scmp.lt.s32.totalorder %s10, 4
    // Predicated region
    $region17: #{tpu_custom_call.1} parent=5 // pred_check
      %p180 = pneg %p179
    $region18: #{tpu_custom_call.1} parent=5 // pred_check_branch
      %182 = sbr.rel (%p180) target = $region20
    $region19: #{tpu_custom_call.1} parent=5 // pred_region
      // Predicated region
      $region21: #{tpu_custom_call.1} parent=19 // pred_check
        %p183 = pneg %p42
      $region22: #{tpu_custom_call.1} parent=19 // pred_check_branch
        %185 = sbr.rel (%p183) target = $region24
      $region23: #{tpu_custom_call.1} parent=19 // pred_region
        %s186 = smul.u32 32, %s18
        %p187 = scmp.lt.s32.totalorder %s186, 127
        %s188 = scalar_select %p187, %s186, 127
        %s189 = smul.addr %s188, 2
        %s190 = smul.addr %s189, 8
        %s191 = scalar_lea.vmem %s0, %s190
        %s192 = smul.u32 32, %s18
      $region24: #{tpu_custom_call.1} parent=19 // pred_fallthru
        _
      // Predicated region
      $region25: #{tpu_custom_call.1} parent=19 // pred_check
        %p193 = pneg %p68
      $region26: #{tpu_custom_call.1} parent=19 // pred_check_branch
        %195 = sbr.rel (%p193) target = $region28
      $region27: #{tpu_custom_call.1} parent=19 // pred_region
        %s196 = smul.u32 32, %s18
        %p197 = scmp.lt.s32.totalorder %s196, 127
        %s198 = scalar_select %p197, %s196, 127
        %s199 = smul.addr %s198, 8
        %s200 = scalar_lea.vmem %s1, %s199
        %s201 = smul.u32 32, %s18
      $region28: #{tpu_custom_call.1} parent=19 // pred_fallthru
        _
      // Predicated region
      $region29: #{tpu_custom_call.1} parent=19 // pred_check
        %p202 = pneg %p122
      $region30: #{tpu_custom_call.1} parent=19 // pred_check_branch
        %204 = sbr.rel (%p202) target = $region32
      $region31: #{tpu_custom_call.1} parent=19 // pred_region
        %s205 = smul.u32 32, %s18
        %p206 = scmp.lt.s32.totalorder %s17, 0
        %s207 = scalar_select %p206, %s17, 0
        %p208 = scmp.lt.s32.totalorder %s205, 127
        %s209 = scalar_select %p208, %s205, 127
        %s210 = smul.addr %s209, 7
        %s211 = smul.addr %s207, 896
        %s212 = sadd.s32 %s210, %s211
        %s213 = smul.addr %s212, 8
        %s214 = scalar_lea.vmem %s3, %s213
        %s215 = smul.u32 32, %s18
      $region32: #{tpu_custom_call.1} parent=19 // pred_fallthru
        _
    $region20: #{tpu_custom_call.1} parent=5 // pred_fallthru
      _
    %p216 = scmp.le.s32.totalorder 1, %s10
    %p217 = scmp.lt.s32.totalorder %s10, 5
    %p218 = pnand %p216, %p217
    %p219 = pneg %p218
    // Predicated region
    $region33: #{tpu_custom_call.1} parent=5 // pred_check
      _
    $region34: #{tpu_custom_call.1} parent=5 // pred_check_branch
      %221 = sbr.rel (%p218) target = $region36
    $region35: #{tpu_custom_call.1} parent=5 // pred_region
      %s222 = ssub.s32 %s10, 1
      %s223 = smul.u32 32, %s20
      %p224 = scmp.lt.s32.totalorder %s223, 127
      %s225 = scalar_select %p224, %s223, 127
      %s226 = smul.addr %s225, 2
      %s227 = smul.addr %s226, 8
      %s228 = scalar_lea.vmem %s0, %s227
      %p229 = pneg %p48
      %p230 = pneg %p45
      %s231 = smul.u32 32, %s20
      %p232 = scmp.lt.s32.totalorder %s231, 127
      %s233 = scalar_select %p232, %s231, 127
      %s234 = smul.addr %s233, 8
      %s235 = scalar_lea.vmem %s1, %s234
      %p236 = pneg %p74
      %p237 = pneg %p71
      %p238 = scmp.lt.s32.totalorder %s19, 0
      %s239 = scalar_select %p238, %s19, 0
      %s240 = smul.addr %s239, 224
      %s241 = smul.addr %s240, 8
      %s242 = scalar_lea.vmem %s2, %s241
      %p243 = pneg %p100
      %p244 = pneg %p97
      %s245 = smul.u32 32, %s20
      %p246 = scmp.lt.s32.totalorder %s19, 0
      %s247 = scalar_select %p246, %s19, 0
      %p248 = scmp.lt.s32.totalorder %s245, 127
      %s249 = scalar_select %p248, %s245, 127
      %s250 = smul.addr %s249, 7
      %s251 = smul.addr %s247, 896
      %s252 = sadd.s32 %s250, %s251
      %s253 = smul.addr %s252, 8
      %s254 = scalar_lea.vmem %s3, %s253
      %p255 = pneg %p128
      %p256 = pneg %p125
      %p257 = pneg %p156
      %p258 = pneg %p153
      %s259 = smul.u32 32, %s20
      %p260 = scmp.lt.s32.totalorder %s19, 0
      %s261 = scalar_select %p260, %s19, 0
      %p262 = scmp.lt.s32.totalorder %s259, 127
      %s263 = scalar_select %p262, %s259, 127
      %s264 = smul.addr %s263, 7
      %s265 = smul.addr %s261, 896
      %s266 = sadd.s32 %s264, %s265
      %s267 = smul.addr %s266, 8
      %s268 = scalar_lea.vmem %s4, %s267
      %s269 = smul.u32 32, %s20
      %p270 = scmp.lt.s32.totalorder %s269, 127
      %s271 = scalar_select %p270, %s269, 127
      %s272 = smul.addr %s271, 2
      %s273 = smul.addr %s272, 8
      %s274 = scalar_lea.vmem %s0, %s273
      %s275 = smul.u32 32, %s20
      %s276 = smul.u32 32, %s20
      %p277 = scmp.lt.s32.totalorder %s276, 127
      %s278 = scalar_select %p277, %s276, 127
      %s279 = smul.addr %s278, 8
      %s280 = scalar_lea.vmem %s1, %s279
      %s281 = smul.u32 32, %s20
      %p282 = scmp.lt.s32.totalorder %s19, 0
      %s283 = scalar_select %p282, %s19, 0
      %s284 = smul.addr %s283, 224
      %s285 = smul.addr %s284, 8
      %s286 = scalar_lea.vmem %s2, %s285
      %s287 = smul.u32 32, %s20
      %p288 = scmp.lt.s32.totalorder %s19, 0
      %s289 = scalar_select %p288, %s19, 0
      %p290 = scmp.lt.s32.totalorder %s287, 127
      %s291 = scalar_select %p290, %s287, 127
      %s292 = smul.addr %s291, 7
      %s293 = smul.addr %s289, 896
      %s294 = sadd.s32 %s292, %s293
      %s295 = smul.addr %s294, 8
      %s296 = scalar_lea.vmem %s3, %s295
      %s297 = smul.u32 32, %s20
      %s298 = smul.u32 32, %s20
      %p299 = scmp.lt.s32.totalorder %s19, 0
      %s300 = scalar_select %p299, %s19, 0
      %p301 = scmp.lt.s32.totalorder %s298, 127
      %s302 = scalar_select %p301, %s298, 127
      %s303 = smul.addr %s302, 7
      %s304 = smul.addr %s300, 896
      %s305 = sadd.s32 %s303, %s304
      %s306 = smul.addr %s305, 8
      %s307 = scalar_lea.vmem %s4, %s306
      %s308 = smul.u32 32, %s20
      %v309 = vld [vmem:[%s274] sm:$0xff]
      %v310 = vld [vmem:[%s274 + $0x8] sm:$0xff]
      %v311 = vld [vmem:[%s274 + $0x10] sm:$0xff]
      %v312 = vld [vmem:[%s274 + $0x18] sm:$0xff]
      %v313 = vld [vmem:[%s274 + $0x20] sm:$0xff]
      %v314 = vld [vmem:[%s274 + $0x28] sm:$0xff]
      %v315 = vld [vmem:[%s274 + $0x30] sm:$0xff]
      %v316 = vld [vmem:[%s274 + $0x38] sm:$0xff]
      %v317 = vld [vmem:[%s274 + $0x40] sm:$0xff]
      %v318 = vld [vmem:[%s274 + $0x48] sm:$0xff]
      %v319 = vld [vmem:[%s274 + $0x50] sm:$0xff]
      %v320 = vld [vmem:[%s274 + $0x58] sm:$0xff]
      %v321 = vld [vmem:[%s274 + $0x60] sm:$0xff]
      %v322 = vld [vmem:[%s274 + $0x68] sm:$0xff]
      %v323 = vld [vmem:[%s274 + $0x70] sm:$0xff]
      %v324 = vld [vmem:[%s274 + $0x78] sm:$0xff]
      %v325 = vld [vmem:[%s274 + $0x80] sm:$0xff]
      %v326 = vld [vmem:[%s274 + $0x88] sm:$0xff]
      %v327 = vld [vmem:[%s274 + $0x90] sm:$0xff]
      %v328 = vld [vmem:[%s274 + $0x98] sm:$0xff]
      %v329 = vld [vmem:[%s274 + $0xa0] sm:$0xff]
      %v330 = vld [vmem:[%s274 + $0xa8] sm:$0xff]
      %v331 = vld [vmem:[%s274 + $0xb0] sm:$0xff]
      %v332 = vld [vmem:[%s274 + $0xb8] sm:$0xff]
      %v333 = vld [vmem:[%s274 + $0xc0] sm:$0xff]
      %v334 = vld [vmem:[%s274 + $0xc8] sm:$0xff]
      %v335 = vld [vmem:[%s274 + $0xd0] sm:$0xff]
      %v336 = vld [vmem:[%s274 + $0xd8] sm:$0xff]
      %v337 = vld [vmem:[%s274 + $0xe0] sm:$0xff]
      %v338 = vld [vmem:[%s274 + $0xe8] sm:$0xff]
      %v339 = vld [vmem:[%s274 + $0xf0] sm:$0xff]
      %v340 = vld [vmem:[%s274 + $0xf8] sm:$0xff]
      %v341 = vld [vmem:[%s274 + $0x100] sm:$0xff]
      %v342 = vld [vmem:[%s274 + $0x108] sm:$0xff]
      %v343 = vld [vmem:[%s274 + $0x110] sm:$0xff]
      %v344 = vld [vmem:[%s274 + $0x118] sm:$0xff]
      %v345 = vld [vmem:[%s274 + $0x120] sm:$0xff]
      %v346 = vld [vmem:[%s274 + $0x128] sm:$0xff]
      %v347 = vld [vmem:[%s274 + $0x130] sm:$0xff]
      %v348 = vld [vmem:[%s274 + $0x138] sm:$0xff]
      %v349 = vld [vmem:[%s274 + $0x140] sm:$0xff]
      %v350 = vld [vmem:[%s274 + $0x148] sm:$0xff]
      %v351 = vld [vmem:[%s274 + $0x150] sm:$0xff]
      %v352 = vld [vmem:[%s274 + $0x158] sm:$0xff]
      %v353 = vld [vmem:[%s274 + $0x160] sm:$0xff]
      %v354 = vld [vmem:[%s274 + $0x168] sm:$0xff]
      %v355 = vld [vmem:[%s274 + $0x170] sm:$0xff]
      %v356 = vld [vmem:[%s274 + $0x178] sm:$0xff]
      %v357 = vld [vmem:[%s274 + $0x180] sm:$0xff]
      %v358 = vld [vmem:[%s274 + $0x188] sm:$0xff]
      %v359 = vld [vmem:[%s274 + $0x190] sm:$0xff]
      %v360 = vld [vmem:[%s274 + $0x198] sm:$0xff]
      %v361 = vld [vmem:[%s274 + $0x1a0] sm:$0xff]
      %v362 = vld [vmem:[%s274 + $0x1a8] sm:$0xff]
      %v363 = vld [vmem:[%s274 + $0x1b0] sm:$0xff]
      %v364 = vld [vmem:[%s274 + $0x1b8] sm:$0xff]
      %v365 = vld [vmem:[%s274 + $0x1c0] sm:$0xff]
      %v366 = vld [vmem:[%s274 + $0x1c8] sm:$0xff]
      %v367 = vld [vmem:[%s274 + $0x1d0] sm:$0xff]
      %v368 = vld [vmem:[%s274 + $0x1d8] sm:$0xff]
      %v369 = vld [vmem:[%s274 + $0x1e0] sm:$0xff]
      %v370 = vld [vmem:[%s274 + $0x1e8] sm:$0xff]
      %v371 = vld [vmem:[%s274 + $0x1f0] sm:$0xff]
      %v372 = vld [vmem:[%s274 + $0x1f8] sm:$0xff]
      %v373 = vld [vmem:[%s286] sm:$0xff]
      %v374 = vld [vmem:[%s286 + $0x8] sm:$0xff]
      %v375 = vld [vmem:[%s286 + $0x10] sm:$0xff]
      %v376 = vld [vmem:[%s286 + $0x18] sm:$0xff]
      %v377 = vld [vmem:[%s286 + $0x20] sm:$0xff]
      %v378 = vld [vmem:[%s286 + $0x28] sm:$0xff]
      %v379 = vld [vmem:[%s286 + $0x30] sm:$0xff]
      %v380 = vld [vmem:[%s286 + $0x38] sm:$0xff]
      %v381 = vld [vmem:[%s286 + $0x40] sm:$0xff]
      %v382 = vld [vmem:[%s286 + $0x48] sm:$0xff]
      %v383 = vld [vmem:[%s286 + $0x50] sm:$0xff]
      %v384 = vld [vmem:[%s286 + $0x58] sm:$0xff]
      %v385 = vld [vmem:[%s286 + $0x60] sm:$0xff]
      %v386 = vld [vmem:[%s286 + $0x68] sm:$0xff]
      %v387 = vld [vmem:[%s286 + $0x70] sm:$0xff]
      %v388 = vld [vmem:[%s286 + $0x78] sm:$0xff]
      %v389 = vld [vmem:[%s286 + $0x80] sm:$0xff]
      %v390 = vld [vmem:[%s286 + $0x88] sm:$0xff]
      %v391 = vld [vmem:[%s286 + $0x90] sm:$0xff]
      %v392 = vld [vmem:[%s286 + $0x98] sm:$0xff]
      %v393 = vld [vmem:[%s286 + $0xa0] sm:$0xff]
      %v394 = vld [vmem:[%s286 + $0xa8] sm:$0xff]
      %v395 = vld [vmem:[%s286 + $0xb0] sm:$0xff]
      %v396 = vld [vmem:[%s286 + $0xb8] sm:$0xff]
      %v397 = vld [vmem:[%s286 + $0xc0] sm:$0xff]
      %v398 = vld [vmem:[%s286 + $0xc8] sm:$0xff]
      %v399 = vld [vmem:[%s286 + $0xd0] sm:$0xff]
      %v400 = vld [vmem:[%s286 + $0xd8] sm:$0xff]
      %v401 = vld [vmem:[%s286 + $0xe0] sm:$0xff]
      %v402 = vld [vmem:[%s286 + $0xe8] sm:$0xff]
      %v403 = vld [vmem:[%s286 + $0xf0] sm:$0xff]
      %v404 = vld [vmem:[%s286 + $0xf8] sm:$0xff]
      %v405 = vld [vmem:[%s286 + $0x100] sm:$0xff]
      %v406 = vld [vmem:[%s286 + $0x108] sm:$0xff]
      %v407 = vld [vmem:[%s286 + $0x110] sm:$0xff]
      %v408 = vld [vmem:[%s286 + $0x118] sm:$0xff]
      %v409 = vld [vmem:[%s286 + $0x120] sm:$0xff]
      %v410 = vld [vmem:[%s286 + $0x128] sm:$0xff]
      %v411 = vld [vmem:[%s286 + $0x130] sm:$0xff]
      %v412 = vld [vmem:[%s286 + $0x138] sm:$0xff]
      %v413 = vld [vmem:[%s286 + $0x140] sm:$0xff]
      %v414 = vld [vmem:[%s286 + $0x148] sm:$0xff]
      %v415 = vld [vmem:[%s286 + $0x150] sm:$0xff]
      %v416 = vld [vmem:[%s286 + $0x158] sm:$0xff]
      %v417 = vld [vmem:[%s286 + $0x160] sm:$0xff]
      %v418 = vld [vmem:[%s286 + $0x168] sm:$0xff]
      %v419 = vld [vmem:[%s286 + $0x170] sm:$0xff]
      %v420 = vld [vmem:[%s286 + $0x178] sm:$0xff]
      %v421 = vld [vmem:[%s286 + $0x180] sm:$0xff]
      %v422 = vld [vmem:[%s286 + $0x188] sm:$0xff]
      %v423 = vld [vmem:[%s286 + $0x190] sm:$0xff]
      %v424 = vld [vmem:[%s286 + $0x198] sm:$0xff]
      %v425 = vld [vmem:[%s286 + $0x1a0] sm:$0xff]
      %v426 = vld [vmem:[%s286 + $0x1a8] sm:$0xff]
      %v427 = vld [vmem:[%s286 + $0x1b0] sm:$0xff]
      %v428 = vld [vmem:[%s286 + $0x1b8] sm:$0xff]
      %v429 = vld [vmem:[%s286 + $0x1c0] sm:$0xff]
      %v430 = vld [vmem:[%s286 + $0x1c8] sm:$0xff]
      %v431 = vld [vmem:[%s286 + $0x1d0] sm:$0xff]
      %v432 = vld [vmem:[%s286 + $0x1d8] sm:$0xff]
      %v433 = vld [vmem:[%s286 + $0x1e0] sm:$0xff]
      %v434 = vld [vmem:[%s286 + $0x1e8] sm:$0xff]
      %v435 = vld [vmem:[%s286 + $0x1f0] sm:$0xff]
      %v436 = vld [vmem:[%s286 + $0x1f8] sm:$0xff]
      %v437 = vld [vmem:[%s286 + $0x200] sm:$0xff]
      %v438 = vld [vmem:[%s286 + $0x208] sm:$0xff]
      %v439 = vld [vmem:[%s286 + $0x210] sm:$0xff]
      %v440 = vld [vmem:[%s286 + $0x218] sm:$0xff]
      %v441 = vld [vmem:[%s286 + $0x220] sm:$0xff]
      %v442 = vld [vmem:[%s286 + $0x228] sm:$0xff]
      %v443 = vld [vmem:[%s286 + $0x230] sm:$0xff]
      %v444 = vld [vmem:[%s286 + $0x238] sm:$0xff]
      %v445 = vld [vmem:[%s286 + $0x240] sm:$0xff]
      %v446 = vld [vmem:[%s286 + $0x248] sm:$0xff]
      %v447 = vld [vmem:[%s286 + $0x250] sm:$0xff]
      %v448 = vld [vmem:[%s286 + $0x258] sm:$0xff]
      %v449 = vld [vmem:[%s286 + $0x260] sm:$0xff]
      %v450 = vld [vmem:[%s286 + $0x268] sm:$0xff]
      %v451 = vld [vmem:[%s286 + $0x270] sm:$0xff]
      %v452 = vld [vmem:[%s286 + $0x278] sm:$0xff]
      %v453 = vld [vmem:[%s286 + $0x280] sm:$0xff]
      %v454 = vld [vmem:[%s286 + $0x288] sm:$0xff]
      %v455 = vld [vmem:[%s286 + $0x290] sm:$0xff]
      %v456 = vld [vmem:[%s286 + $0x298] sm:$0xff]
      %v457 = vld [vmem:[%s286 + $0x2a0] sm:$0xff]
      %v458 = vld [vmem:[%s286 + $0x2a8] sm:$0xff]
      %v459 = vld [vmem:[%s286 + $0x2b0] sm:$0xff]
      %v460 = vld [vmem:[%s286 + $0x2b8] sm:$0xff]
      %v461 = vld [vmem:[%s286 + $0x2c0] sm:$0xff]
      %v462 = vld [vmem:[%s286 + $0x2c8] sm:$0xff]
      %v463 = vld [vmem:[%s286 + $0x2d0] sm:$0xff]
      %v464 = vld [vmem:[%s286 + $0x2d8] sm:$0xff]
      %v465 = vld [vmem:[%s286 + $0x2e0] sm:$0xff]
      %v466 = vld [vmem:[%s286 + $0x2e8] sm:$0xff]
      %v467 = vld [vmem:[%s286 + $0x2f0] sm:$0xff]
      %v468 = vld [vmem:[%s286 + $0x2f8] sm:$0xff]
      %v469 = vld [vmem:[%s286 + $0x300] sm:$0xff]
      %v470 = vld [vmem:[%s286 + $0x308] sm:$0xff]
      %v471 = vld [vmem:[%s286 + $0x310] sm:$0xff]
      %v472 = vld [vmem:[%s286 + $0x318] sm:$0xff]
      %v473 = vld [vmem:[%s286 + $0x320] sm:$0xff]
      %v474 = vld [vmem:[%s286 + $0x328] sm:$0xff]
      %v475 = vld [vmem:[%s286 + $0x330] sm:$0xff]
      %v476 = vld [vmem:[%s286 + $0x338] sm:$0xff]
      %v477 = vld [vmem:[%s286 + $0x340] sm:$0xff]
      %v478 = vld [vmem:[%s286 + $0x348] sm:$0xff]
      %v479 = vld [vmem:[%s286 + $0x350] sm:$0xff]
      %v480 = vld [vmem:[%s286 + $0x358] sm:$0xff]
      %v481 = vld [vmem:[%s286 + $0x360] sm:$0xff]
      %v482 = vld [vmem:[%s286 + $0x368] sm:$0xff]
      %v483 = vld [vmem:[%s286 + $0x370] sm:$0xff]
      %v484 = vld [vmem:[%s286 + $0x378] sm:$0xff]
      %v485 = vld [vmem:[%s286 + $0x380] sm:$0xff]
      %v486 = vld [vmem:[%s286 + $0x388] sm:$0xff]
      %v487 = vld [vmem:[%s286 + $0x390] sm:$0xff]
      %v488 = vld [vmem:[%s286 + $0x398] sm:$0xff]
      %v489 = vld [vmem:[%s286 + $0x3a0] sm:$0xff]
      %v490 = vld [vmem:[%s286 + $0x3a8] sm:$0xff]
      %v491 = vld [vmem:[%s286 + $0x3b0] sm:$0xff]
      %v492 = vld [vmem:[%s286 + $0x3b8] sm:$0xff]
      %v493 = vld [vmem:[%s286 + $0x3c0] sm:$0xff]
      %v494 = vld [vmem:[%s286 + $0x3c8] sm:$0xff]
      %v495 = vld [vmem:[%s286 + $0x3d0] sm:$0xff]
      %v496 = vld [vmem:[%s286 + $0x3d8] sm:$0xff]
      %v497 = vld [vmem:[%s286 + $0x3e0] sm:$0xff]
      %v498 = vld [vmem:[%s286 + $0x3e8] sm:$0xff]
      %v499 = vld [vmem:[%s286 + $0x3f0] sm:$0xff]
      %v500 = vld [vmem:[%s286 + $0x3f8] sm:$0xff]
      %v501 = vld [vmem:[%s286 + $0x400] sm:$0xff]
      %v502 = vld [vmem:[%s286 + $0x408] sm:$0xff]
      %v503 = vld [vmem:[%s286 + $0x410] sm:$0xff]
      %v504 = vld [vmem:[%s286 + $0x418] sm:$0xff]
      %v505 = vld [vmem:[%s286 + $0x420] sm:$0xff]
      %v506 = vld [vmem:[%s286 + $0x428] sm:$0xff]
      %v507 = vld [vmem:[%s286 + $0x430] sm:$0xff]
      %v508 = vld [vmem:[%s286 + $0x438] sm:$0xff]
      %v509 = vld [vmem:[%s286 + $0x440] sm:$0xff]
      %v510 = vld [vmem:[%s286 + $0x448] sm:$0xff]
      %v511 = vld [vmem:[%s286 + $0x450] sm:$0xff]
      %v512 = vld [vmem:[%s286 + $0x458] sm:$0xff]
      %v513 = vld [vmem:[%s286 + $0x460] sm:$0xff]
      %v514 = vld [vmem:[%s286 + $0x468] sm:$0xff]
      %v515 = vld [vmem:[%s286 + $0x470] sm:$0xff]
      %v516 = vld [vmem:[%s286 + $0x478] sm:$0xff]
      %v517 = vld [vmem:[%s286 + $0x480] sm:$0xff]
      %v518 = vld [vmem:[%s286 + $0x488] sm:$0xff]
      %v519 = vld [vmem:[%s286 + $0x490] sm:$0xff]
      %v520 = vld [vmem:[%s286 + $0x498] sm:$0xff]
      %v521 = vld [vmem:[%s286 + $0x4a0] sm:$0xff]
      %v522 = vld [vmem:[%s286 + $0x4a8] sm:$0xff]
      %v523 = vld [vmem:[%s286 + $0x4b0] sm:$0xff]
      %v524 = vld [vmem:[%s286 + $0x4b8] sm:$0xff]
      %v525 = vld [vmem:[%s286 + $0x4c0] sm:$0xff]
      %v526 = vld [vmem:[%s286 + $0x4c8] sm:$0xff]
      %v527 = vld [vmem:[%s286 + $0x4d0] sm:$0xff]
      %v528 = vld [vmem:[%s286 + $0x4d8] sm:$0xff]
      %v529 = vld [vmem:[%s286 + $0x4e0] sm:$0xff]
      %v530 = vld [vmem:[%s286 + $0x4e8] sm:$0xff]
      %v531 = vld [vmem:[%s286 + $0x4f0] sm:$0xff]
      %v532 = vld [vmem:[%s286 + $0x4f8] sm:$0xff]
      %v533 = vld [vmem:[%s286 + $0x500] sm:$0xff]
      %v534 = vld [vmem:[%s286 + $0x508] sm:$0xff]
      %v535 = vld [vmem:[%s286 + $0x510] sm:$0xff]
      %v536 = vld [vmem:[%s286 + $0x518] sm:$0xff]
      %v537 = vld [vmem:[%s286 + $0x520] sm:$0xff]
      %v538 = vld [vmem:[%s286 + $0x528] sm:$0xff]
      %v539 = vld [vmem:[%s286 + $0x530] sm:$0xff]
      %v540 = vld [vmem:[%s286 + $0x538] sm:$0xff]
      %v541 = vld [vmem:[%s286 + $0x540] sm:$0xff]
      %v542 = vld [vmem:[%s286 + $0x548] sm:$0xff]
      %v543 = vld [vmem:[%s286 + $0x550] sm:$0xff]
      %v544 = vld [vmem:[%s286 + $0x558] sm:$0xff]
      %v545 = vld [vmem:[%s286 + $0x560] sm:$0xff]
      %v546 = vld [vmem:[%s286 + $0x568] sm:$0xff]
      %v547 = vld [vmem:[%s286 + $0x570] sm:$0xff]
      %v548 = vld [vmem:[%s286 + $0x578] sm:$0xff]
      %v549 = vld [vmem:[%s286 + $0x580] sm:$0xff]
      %v550 = vld [vmem:[%s286 + $0x588] sm:$0xff]
      %v551 = vld [vmem:[%s286 + $0x590] sm:$0xff]
      %v552 = vld [vmem:[%s286 + $0x598] sm:$0xff]
      %v553 = vld [vmem:[%s286 + $0x5a0] sm:$0xff]
      %v554 = vld [vmem:[%s286 + $0x5a8] sm:$0xff]
      %v555 = vld [vmem:[%s286 + $0x5b0] sm:$0xff]
      %v556 = vld [vmem:[%s286 + $0x5b8] sm:$0xff]
      %v557 = vld [vmem:[%s286 + $0x5c0] sm:$0xff]
      %v558 = vld [vmem:[%s286 + $0x5c8] sm:$0xff]
      %v559 = vld [vmem:[%s286 + $0x5d0] sm:$0xff]
      %v560 = vld [vmem:[%s286 + $0x5d8] sm:$0xff]
      %v561 = vld [vmem:[%s286 + $0x5e0] sm:$0xff]
      %v562 = vld [vmem:[%s286 + $0x5e8] sm:$0xff]
      %v563 = vld [vmem:[%s286 + $0x5f0] sm:$0xff]
      %v564 = vld [vmem:[%s286 + $0x5f8] sm:$0xff]
      %v565 = vld [vmem:[%s286 + $0x600] sm:$0xff]
      %v566 = vld [vmem:[%s286 + $0x608] sm:$0xff]
      %v567 = vld [vmem:[%s286 + $0x610] sm:$0xff]
      %v568 = vld [vmem:[%s286 + $0x618] sm:$0xff]
      %v569 = vld [vmem:[%s286 + $0x620] sm:$0xff]
      %v570 = vld [vmem:[%s286 + $0x628] sm:$0xff]
      %v571 = vld [vmem:[%s286 + $0x630] sm:$0xff]
      %v572 = vld [vmem:[%s286 + $0x638] sm:$0xff]
      %v573 = vld [vmem:[%s286 + $0x640] sm:$0xff]
      %v574 = vld [vmem:[%s286 + $0x648] sm:$0xff]
      %v575 = vld [vmem:[%s286 + $0x650] sm:$0xff]
      %v576 = vld [vmem:[%s286 + $0x658] sm:$0xff]
      %v577 = vld [vmem:[%s286 + $0x660] sm:$0xff]
      %v578 = vld [vmem:[%s286 + $0x668] sm:$0xff]
      %v579 = vld [vmem:[%s286 + $0x670] sm:$0xff]
      %v580 = vld [vmem:[%s286 + $0x678] sm:$0xff]
      %v581 = vld [vmem:[%s286 + $0x680] sm:$0xff]
      %v582 = vld [vmem:[%s286 + $0x688] sm:$0xff]
      %v583 = vld [vmem:[%s286 + $0x690] sm:$0xff]
      %v584 = vld [vmem:[%s286 + $0x698] sm:$0xff]
      %v585 = vld [vmem:[%s286 + $0x6a0] sm:$0xff]
      %v586 = vld [vmem:[%s286 + $0x6a8] sm:$0xff]
      %v587 = vld [vmem:[%s286 + $0x6b0] sm:$0xff]
      %v588 = vld [vmem:[%s286 + $0x6b8] sm:$0xff]
      %v589 = vld [vmem:[%s286 + $0x6c0] sm:$0xff]
      %v590 = vld [vmem:[%s286 + $0x6c8] sm:$0xff]
      %v591 = vld [vmem:[%s286 + $0x6d0] sm:$0xff]
      %v592 = vld [vmem:[%s286 + $0x6d8] sm:$0xff]
      %v593 = vld [vmem:[%s286 + $0x6e0] sm:$0xff]
      %v594 = vld [vmem:[%s286 + $0x6e8] sm:$0xff]
      %v595 = vld [vmem:[%s286 + $0x6f0] sm:$0xff]
      %v596 = vld [vmem:[%s286 + $0x6f8] sm:$0xff]
      %v597 = vld [vmem:[%s280] sm:$0xff]
      %v598 = vld [vmem:[%s280 + $0x8] sm:$0xff]
      %v599 = vld [vmem:[%s280 + $0x10] sm:$0xff]
      %v600 = vld [vmem:[%s280 + $0x18] sm:$0xff]
      %v601 = vld [vmem:[%s280 + $0x20] sm:$0xff]
      %v602 = vld [vmem:[%s280 + $0x28] sm:$0xff]
      %v603 = vld [vmem:[%s280 + $0x30] sm:$0xff]
      %v604 = vld [vmem:[%s280 + $0x38] sm:$0xff]
      %v605 = vld [vmem:[%s280 + $0x40] sm:$0xff]
      %v606 = vld [vmem:[%s280 + $0x48] sm:$0xff]
      %v607 = vld [vmem:[%s280 + $0x50] sm:$0xff]
      %v608 = vld [vmem:[%s280 + $0x58] sm:$0xff]
      %v609 = vld [vmem:[%s280 + $0x60] sm:$0xff]
      %v610 = vld [vmem:[%s280 + $0x68] sm:$0xff]
      %v611 = vld [vmem:[%s280 + $0x70] sm:$0xff]
      %v612 = vld [vmem:[%s280 + $0x78] sm:$0xff]
      %v613 = vld [vmem:[%s280 + $0x80] sm:$0xff]
      %v614 = vld [vmem:[%s280 + $0x88] sm:$0xff]
      %v615 = vld [vmem:[%s280 + $0x90] sm:$0xff]
      %v616 = vld [vmem:[%s280 + $0x98] sm:$0xff]
      %v617 = vld [vmem:[%s280 + $0xa0] sm:$0xff]
      %v618 = vld [vmem:[%s280 + $0xa8] sm:$0xff]
      %v619 = vld [vmem:[%s280 + $0xb0] sm:$0xff]
      %v620 = vld [vmem:[%s280 + $0xb8] sm:$0xff]
      %v621 = vld [vmem:[%s280 + $0xc0] sm:$0xff]
      %v622 = vld [vmem:[%s280 + $0xc8] sm:$0xff]
      %v623 = vld [vmem:[%s280 + $0xd0] sm:$0xff]
      %v624 = vld [vmem:[%s280 + $0xd8] sm:$0xff]
      %v625 = vld [vmem:[%s280 + $0xe0] sm:$0xff]
      %v626 = vld [vmem:[%s280 + $0xe8] sm:$0xff]
      %v627 = vld [vmem:[%s280 + $0xf0] sm:$0xff]
      %v628 = vld [vmem:[%s280 + $0xf8] sm:$0xff]
      %630 = vset.pattern.permute.xlu0 0
      %631 = vperm.xlu0 %630, %v597
      %v632 = vpop.permute.xlu0 %631
      %635 = vset.pattern.permute.xlu0 0
      %636 = vperm.xlu0 %635, %v598
      %v637 = vpop.permute.xlu0 %636
      %640 = vset.pattern.permute.xlu0 0
      %641 = vperm.xlu0 %640, %v599
      %v642 = vpop.permute.xlu0 %641
      %645 = vset.pattern.permute.xlu0 0
      %646 = vperm.xlu0 %645, %v600
      %v647 = vpop.permute.xlu0 %646
      %650 = vset.pattern.permute.xlu0 0
      %651 = vperm.xlu0 %650, %v601
      %v652 = vpop.permute.xlu0 %651
      %655 = vset.pattern.permute.xlu0 0
      %656 = vperm.xlu0 %655, %v602
      %v657 = vpop.permute.xlu0 %656
      %660 = vset.pattern.permute.xlu0 0
      %661 = vperm.xlu0 %660, %v603
      %v662 = vpop.permute.xlu0 %661
      %665 = vset.pattern.permute.xlu0 0
      %666 = vperm.xlu0 %665, %v604
      %v667 = vpop.permute.xlu0 %666
      %670 = vset.pattern.permute.xlu0 0
      %671 = vperm.xlu0 %670, %v605
      %v672 = vpop.permute.xlu0 %671
      %675 = vset.pattern.permute.xlu0 0
      %676 = vperm.xlu0 %675, %v606
      %v677 = vpop.permute.xlu0 %676
      %680 = vset.pattern.permute.xlu0 0
      %681 = vperm.xlu0 %680, %v607
      %v682 = vpop.permute.xlu0 %681
      %685 = vset.pattern.permute.xlu0 0
      %686 = vperm.xlu0 %685, %v608
      %v687 = vpop.permute.xlu0 %686
      %690 = vset.pattern.permute.xlu0 0
      %691 = vperm.xlu0 %690, %v609
      %v692 = vpop.permute.xlu0 %691
      %695 = vset.pattern.permute.xlu0 0
      %696 = vperm.xlu0 %695, %v610
      %v697 = vpop.permute.xlu0 %696
      %700 = vset.pattern.permute.xlu0 0
      %701 = vperm.xlu0 %700, %v611
      %v702 = vpop.permute.xlu0 %701
      %705 = vset.pattern.permute.xlu0 0
      %706 = vperm.xlu0 %705, %v612
      %v707 = vpop.permute.xlu0 %706
      %710 = vset.pattern.permute.xlu0 0
      %711 = vperm.xlu0 %710, %v613
      %v712 = vpop.permute.xlu0 %711
      %715 = vset.pattern.permute.xlu0 0
      %716 = vperm.xlu0 %715, %v614
      %v717 = vpop.permute.xlu0 %716
      %720 = vset.pattern.permute.xlu0 0
      %721 = vperm.xlu0 %720, %v615
      %v722 = vpop.permute.xlu0 %721
      %725 = vset.pattern.permute.xlu0 0
      %726 = vperm.xlu0 %725, %v616
      %v727 = vpop.permute.xlu0 %726
      %730 = vset.pattern.permute.xlu0 0
      %731 = vperm.xlu0 %730, %v617
      %v732 = vpop.permute.xlu0 %731
      %735 = vset.pattern.permute.xlu0 0
      %736 = vperm.xlu0 %735, %v618
      %v737 = vpop.permute.xlu0 %736
      %740 = vset.pattern.permute.xlu0 0
      %741 = vperm.xlu0 %740, %v619
      %v742 = vpop.permute.xlu0 %741
      %745 = vset.pattern.permute.xlu0 0
      %746 = vperm.xlu0 %745, %v620
      %v747 = vpop.permute.xlu0 %746
      %750 = vset.pattern.permute.xlu0 0
      %751 = vperm.xlu0 %750, %v621
      %v752 = vpop.permute.xlu0 %751
      %755 = vset.pattern.permute.xlu0 0
      %756 = vperm.xlu0 %755, %v622
      %v757 = vpop.permute.xlu0 %756
      %760 = vset.pattern.permute.xlu0 0
      %761 = vperm.xlu0 %760, %v623
      %v762 = vpop.permute.xlu0 %761
      %765 = vset.pattern.permute.xlu0 0
      %766 = vperm.xlu0 %765, %v624
      %v767 = vpop.permute.xlu0 %766
      %770 = vset.pattern.permute.xlu0 0
      %771 = vperm.xlu0 %770, %v625
      %v772 = vpop.permute.xlu0 %771
      %775 = vset.pattern.permute.xlu0 0
      %776 = vperm.xlu0 %775, %v626
      %v777 = vpop.permute.xlu0 %776
      %780 = vset.pattern.permute.xlu0 0
      %781 = vperm.xlu0 %780, %v627
      %v782 = vpop.permute.xlu0 %781
      %785 = vset.pattern.permute.xlu0 0
      %786 = vperm.xlu0 %785, %v628
      %v787 = vpop.permute.xlu0 %786
      %789 = vmatprep.subr.mxu0 %v479
      %790 = vmatpush1.msra.mxu0 %v478
      %791 = vmatprep.subr.mxu0 %v472
      %792 = vmatpush1.msra.mxu0 %v471
      %793 = vmatprep.subr.mxu0 %v465
      %794 = vmatpush1.msra.mxu0 %v464
      %795 = vmatprep.subr.mxu0 %v458
      %796 = vmatpush1.msra.mxu0 %v457
      %797 = vmatprep.subr.mxu0 %v451
      %798 = vmatpush1.msra.mxu0 %v450
      %799 = vmatprep.subr.mxu0 %v444
      %800 = vmatpush1.msra.mxu0 %v443
      %801 = vmatprep.subr.mxu0 %v437
      %802 = vmatpush1.msra.mxu0 %v436
      %803 = vmatprep.subr.mxu0 %v430
      %804 = vmatpush1.msra.mxu0 %v429
      %805 = vmatprep.subr.mxu0 %v423
      %806 = vmatpush1.msra.mxu0 %v422
      %807 = vmatprep.subr.mxu0 %v416
      %808 = vmatpush1.msra.mxu0 %v415
      %809 = vmatprep.subr.mxu0 %v409
      %810 = vmatpush1.msra.mxu0 %v408
      %811 = vmatprep.subr.mxu0 %v402
      %812 = vmatpush1.msra.mxu0 %v401
      %813 = vmatprep.subr.mxu0 %v395
      %814 = vmatpush1.msra.mxu0 %v394
      %815 = vmatprep.subr.mxu0 %v388
      %816 = vmatpush1.msra.mxu0 %v387
      %817 = vmatprep.subr.mxu0 %v381
      %818 = vmatpush1.msra.mxu0 %v380
      %819 = vmatprep.subr.mxu0 %v374
      %820 = vmatpush1.msra.mxu0 %v373
      %821 = vmatprep.subr.mxu0 %v591
      %822 = vmatpush2.msra.mxu0 %v590
      %823 = vmatprep.subr.mxu0 %v584
      %824 = vmatpush2.msra.mxu0 %v583
      %825 = vmatprep.subr.mxu0 %v577
      %826 = vmatpush2.msra.mxu0 %v576
      %827 = vmatprep.subr.mxu0 %v570
      %828 = vmatpush2.msra.mxu0 %v569
      %829 = vmatprep.subr.mxu0 %v563
      %830 = vmatpush2.msra.mxu0 %v562
      %831 = vmatprep.subr.mxu0 %v556
      %832 = vmatpush2.msra.mxu0 %v555
      %833 = vmatprep.subr.mxu0 %v549
      %834 = vmatpush2.msra.mxu0 %v548
      %835 = vmatprep.subr.mxu0 %v542
      %836 = vmatpush2.msra.mxu0 %v541
      %837 = vmatprep.subr.mxu0 %v535
      %838 = vmatpush2.msra.mxu0 %v534
      %839 = vmatprep.subr.mxu0 %v528
      %840 = vmatpush2.msra.mxu0 %v527
      %841 = vmatprep.subr.mxu0 %v521
      %842 = vmatpush2.msra.mxu0 %v520
      %843 = vmatprep.subr.mxu0 %v514
      %844 = vmatpush2.msra.mxu0 %v513
      %845 = vmatprep.subr.mxu0 %v507
      %846 = vmatpush2.msra.mxu0 %v506
      %847 = vmatprep.subr.mxu0 %v500
      %848 = vmatpush2.msra.mxu0 %v499
      %849 = vmatprep.subr.mxu0 %v493
      %850 = vmatpush2.msra.mxu0 %v492
      %851 = vmatprep.subr.mxu0 %v486
      %852 = vmatpush2.msra.mxu0 %v485
      %853 = vmatprep.mubr.f32.mxu0 %v310
      %854 = vmatmul.mubr.f32.gmra.mxu0 %v309
      %v855 = vpop.f32.mrf.mxu0
      %v856 = vadd.f32 %v632, %v855
      %v857 = vpop.f32.mrf.mxu0
      %v858 = vadd.f32 %v632, %v857
      %859 = vmatprep.mubr.f32.mxu0 %v312
      %860 = vmatmul.mubr.f32.gmra.mxu0 %v311
      %v861 = vpop.f32.mrf.mxu0
      %v862 = vadd.f32 %v637, %v861
      %v863 = vpop.f32.mrf.mxu0
      %v864 = vadd.f32 %v637, %v863
      %865 = vmatprep.mubr.f32.mxu0 %v314
      %866 = vmatmul.mubr.f32.gmra.mxu0 %v313
      %v867 = vpop.f32.mrf.mxu0
      %v868 = vadd.f32 %v642, %v867
      %v869 = vpop.f32.mrf.mxu0
      %v870 = vadd.f32 %v642, %v869
      %871 = vmatprep.mubr.f32.mxu0 %v316
      %872 = vmatmul.mubr.f32.gmra.mxu0 %v315
      %v873 = vpop.f32.mrf.mxu0
      %v874 = vadd.f32 %v647, %v873
      %v875 = vpop.f32.mrf.mxu0
      %v876 = vadd.f32 %v647, %v875
      %877 = vmatprep.mubr.f32.mxu0 %v318
      %878 = vmatmul.mubr.f32.gmra.mxu0 %v317
      %v879 = vpop.f32.mrf.mxu0
      %v880 = vadd.f32 %v652, %v879
      %v881 = vpop.f32.mrf.mxu0
      %v882 = vadd.f32 %v652, %v881
      %883 = vmatprep.mubr.f32.mxu0 %v320
      %884 = vmatmul.mubr.f32.gmra.mxu0 %v319
      %v885 = vpop.f32.mrf.mxu0
      %v886 = vadd.f32 %v657, %v885
      %v887 = vpop.f32.mrf.mxu0
      %v888 = vadd.f32 %v657, %v887
      %889 = vmatprep.mubr.f32.mxu0 %v322
      %890 = vmatmul.mubr.f32.gmra.mxu0 %v321
      %v891 = vpop.f32.mrf.mxu0
      %v892 = vadd.f32 %v662, %v891
      %v893 = vpop.f32.mrf.mxu0
      %v894 = vadd.f32 %v662, %v893
      %895 = vmatprep.mubr.f32.mxu0 %v324
      %896 = vmatmul.mubr.f32.gmra.mxu0 %v323
      %v897 = vpop.f32.mrf.mxu0
      %v898 = vadd.f32 %v667, %v897
      %v899 = vpop.f32.mrf.mxu0
      %v900 = vadd.f32 %v667, %v899
      %901 = vmatprep.mubr.f32.mxu0 %v326
      %902 = vmatmul.mubr.f32.gmra.mxu0 %v325
      %v903 = vpop.f32.mrf.mxu0
      %v904 = vadd.f32 %v672, %v903
      %v905 = vpop.f32.mrf.mxu0
      %v906 = vadd.f32 %v672, %v905
      %907 = vmatprep.mubr.f32.mxu0 %v328
      %908 = vmatmul.mubr.f32.gmra.mxu0 %v327
      %v909 = vpop.f32.mrf.mxu0
      %v910 = vadd.f32 %v677, %v909
      %v911 = vpop.f32.mrf.mxu0
      %v912 = vadd.f32 %v677, %v911
      %913 = vmatprep.mubr.f32.mxu0 %v330
      %914 = vmatmul.mubr.f32.gmra.mxu0 %v329
      %v915 = vpop.f32.mrf.mxu0
      %v916 = vadd.f32 %v682, %v915
      %v917 = vpop.f32.mrf.mxu0
      %v918 = vadd.f32 %v682, %v917
      %919 = vmatprep.mubr.f32.mxu0 %v332
      %920 = vmatmul.mubr.f32.gmra.mxu0 %v331
      %v921 = vpop.f32.mrf.mxu0
      %v922 = vadd.f32 %v687, %v921
      %v923 = vpop.f32.mrf.mxu0
      %v924 = vadd.f32 %v687, %v923
      %925 = vmatprep.mubr.f32.mxu0 %v334
      %926 = vmatmul.mubr.f32.gmra.mxu0 %v333
      %v927 = vpop.f32.mrf.mxu0
      %v928 = vadd.f32 %v692, %v927
      %v929 = vpop.f32.mrf.mxu0
      %v930 = vadd.f32 %v692, %v929
      %931 = vmatprep.mubr.f32.mxu0 %v336
      %932 = vmatmul.mubr.f32.gmra.mxu0 %v335
      %v933 = vpop.f32.mrf.mxu0
      %v934 = vadd.f32 %v697, %v933
      %v935 = vpop.f32.mrf.mxu0
      %v936 = vadd.f32 %v697, %v935
      %937 = vmatprep.mubr.f32.mxu0 %v338
      %938 = vmatmul.mubr.f32.gmra.mxu0 %v337
      %v939 = vpop.f32.mrf.mxu0
      %v940 = vadd.f32 %v702, %v939
      %v941 = vpop.f32.mrf.mxu0
      %v942 = vadd.f32 %v702, %v941
      %943 = vmatprep.mubr.f32.mxu0 %v340
      %944 = vmatmul.mubr.f32.gmra.mxu0 %v339
      %v945 = vpop.f32.mrf.mxu0
      %v946 = vadd.f32 %v707, %v945
      %v947 = vpop.f32.mrf.mxu0
      %v948 = vadd.f32 %v707, %v947
      %949 = vmatprep.mubr.f32.mxu0 %v342
      %950 = vmatmul.mubr.f32.gmra.mxu0 %v341
      %v951 = vpop.f32.mrf.mxu0
      %v952 = vadd.f32 %v712, %v951
      %v953 = vpop.f32.mrf.mxu0
      %v954 = vadd.f32 %v712, %v953
      %955 = vmatprep.mubr.f32.mxu0 %v344
      %956 = vmatmul.mubr.f32.gmra.mxu0 %v343
      %v957 = vpop.f32.mrf.mxu0
      %v958 = vadd.f32 %v717, %v957
      %v959 = vpop.f32.mrf.mxu0
      %v960 = vadd.f32 %v717, %v959
      %961 = vmatprep.mubr.f32.mxu0 %v346
      %962 = vmatmul.mubr.f32.gmra.mxu0 %v345
      %v963 = vpop.f32.mrf.mxu0
      %v964 = vadd.f32 %v722, %v963
      %v965 = vpop.f32.mrf.mxu0
      %v966 = vadd.f32 %v722, %v965
      %967 = vmatprep.mubr.f32.mxu0 %v348
      %968 = vmatmul.mubr.f32.gmra.mxu0 %v347
      %v969 = vpop.f32.mrf.mxu0
      %v970 = vadd.f32 %v727, %v969
      %v971 = vpop.f32.mrf.mxu0
      %v972 = vadd.f32 %v727, %v971
      %973 = vmatprep.mubr.f32.mxu0 %v350
      %974 = vmatmul.mubr.f32.gmra.mxu0 %v349
      %v975 = vpop.f32.mrf.mxu0
      %v976 = vadd.f32 %v732, %v975
      %v977 = vpop.f32.mrf.mxu0
      %v978 = vadd.f32 %v732, %v977
      %979 = vmatprep.mubr.f32.mxu0 %v352
      %980 = vmatmul.mubr.f32.gmra.mxu0 %v351
      %v981 = vpop.f32.mrf.mxu0
      %v982 = vadd.f32 %v737, %v981
      %v983 = vpop.f32.mrf.mxu0
      %v984 = vadd.f32 %v737, %v983
      %985 = vmatprep.mubr.f32.mxu0 %v354
      %986 = vmatmul.mubr.f32.gmra.mxu0 %v353
      %v987 = vpop.f32.mrf.mxu0
      %v988 = vadd.f32 %v742, %v987
      %v989 = vpop.f32.mrf.mxu0
      %v990 = vadd.f32 %v742, %v989
      %991 = vmatprep.mubr.f32.mxu0 %v356
      %992 = vmatmul.mubr.f32.gmra.mxu0 %v355
      %v993 = vpop.f32.mrf.mxu0
      %v994 = vadd.f32 %v747, %v993
      %v995 = vpop.f32.mrf.mxu0
      %v996 = vadd.f32 %v747, %v995
      %997 = vmatprep.mubr.f32.mxu0 %v358
      %998 = vmatmul.mubr.f32.gmra.mxu0 %v357
      %v999 = vpop.f32.mrf.mxu0
      %v1000 = vadd.f32 %v752, %v999
      %v1001 = vpop.f32.mrf.mxu0
      %v1002 = vadd.f32 %v752, %v1001
      %1003 = vmatprep.mubr.f32.mxu0 %v360
      %1004 = vmatmul.mubr.f32.gmra.mxu0 %v359
      %v1005 = vpop.f32.mrf.mxu0
      %v1006 = vadd.f32 %v757, %v1005
      %v1007 = vpop.f32.mrf.mxu0
      %v1008 = vadd.f32 %v757, %v1007
      %1009 = vmatprep.mubr.f32.mxu0 %v362
      %1010 = vmatmul.mubr.f32.gmra.mxu0 %v361
      %v1011 = vpop.f32.mrf.mxu0
      %v1012 = vadd.f32 %v762, %v1011
      %v1013 = vpop.f32.mrf.mxu0
      %v1014 = vadd.f32 %v762, %v1013
      %1015 = vmatprep.mubr.f32.mxu0 %v364
      %1016 = vmatmul.mubr.f32.gmra.mxu0 %v363
      %v1017 = vpop.f32.mrf.mxu0
      %v1018 = vadd.f32 %v767, %v1017
      %v1019 = vpop.f32.mrf.mxu0
      %v1020 = vadd.f32 %v767, %v1019
      %1021 = vmatprep.mubr.f32.mxu0 %v366
      %1022 = vmatmul.mubr.f32.gmra.mxu0 %v365
      %v1023 = vpop.f32.mrf.mxu0
      %v1024 = vadd.f32 %v772, %v1023
      %v1025 = vpop.f32.mrf.mxu0
      %v1026 = vadd.f32 %v772, %v1025
      %1027 = vmatprep.mubr.f32.mxu0 %v368
      %1028 = vmatmul.mubr.f32.gmra.mxu0 %v367
      %v1029 = vpop.f32.mrf.mxu0
      %v1030 = vadd.f32 %v777, %v1029
      %v1031 = vpop.f32.mrf.mxu0
      %v1032 = vadd.f32 %v777, %v1031
      %1033 = vmatprep.mubr.f32.mxu0 %v370
      %1034 = vmatmul.mubr.f32.gmra.mxu0 %v369
      %v1035 = vpop.f32.mrf.mxu0
      %v1036 = vadd.f32 %v782, %v1035
      %v1037 = vpop.f32.mrf.mxu0
      %v1038 = vadd.f32 %v782, %v1037
      %1039 = vmatprep.mubr.f32.mxu0 %v372
      %1040 = vmatmul.mubr.f32.gmra.mxu0 %v371
      %v1041 = vpop.f32.mrf.mxu0
      %v1042 = vadd.f32 %v787, %v1041
      %v1043 = vpop.f32.mrf.mxu0
      %v1044 = vadd.f32 %v787, %v1043
      %1045 = vdwg.mxu0
      %1046 = vmatprep.subr.mxu0 %v481
      %1047 = vmatpush1.msra.mxu0 %v480
      %1048 = vmatprep.subr.mxu0 %v474
      %1049 = vmatpush1.msra.mxu0 %v473
      %1050 = vmatprep.subr.mxu0 %v467
      %1051 = vmatpush1.msra.mxu0 %v466
      %1052 = vmatprep.subr.mxu0 %v460
      %1053 = vmatpush1.msra.mxu0 %v459
      %1054 = vmatprep.subr.mxu0 %v453
      %1055 = vmatpush1.msra.mxu0 %v452
      %1056 = vmatprep.subr.mxu0 %v446
      %1057 = vmatpush1.msra.mxu0 %v445
      %1058 = vmatprep.subr.mxu0 %v439
      %1059 = vmatpush1.msra.mxu0 %v438
      %1060 = vmatprep.subr.mxu0 %v432
      %1061 = vmatpush1.msra.mxu0 %v431
      %1062 = vmatprep.subr.mxu0 %v425
      %1063 = vmatpush1.msra.mxu0 %v424
      %1064 = vmatprep.subr.mxu0 %v418
      %1065 = vmatpush1.msra.mxu0 %v417
      %1066 = vmatprep.subr.mxu0 %v411
      %1067 = vmatpush1.msra.mxu0 %v410
      %1068 = vmatprep.subr.mxu0 %v404
      %1069 = vmatpush1.msra.mxu0 %v403
      %1070 = vmatprep.subr.mxu0 %v397
      %1071 = vmatpush1.msra.mxu0 %v396
      %1072 = vmatprep.subr.mxu0 %v390
      %1073 = vmatpush1.msra.mxu0 %v389
      %1074 = vmatprep.subr.mxu0 %v383
      %1075 = vmatpush1.msra.mxu0 %v382
      %1076 = vmatprep.subr.mxu0 %v376
      %1077 = vmatpush1.msra.mxu0 %v375
      %1078 = vmatprep.subr.mxu0 %v593
      %1079 = vmatpush2.msra.mxu0 %v592
      %1080 = vmatprep.subr.mxu0 %v586
      %1081 = vmatpush2.msra.mxu0 %v585
      %1082 = vmatprep.subr.mxu0 %v579
      %1083 = vmatpush2.msra.mxu0 %v578
      %1084 = vmatprep.subr.mxu0 %v572
      %1085 = vmatpush2.msra.mxu0 %v571
      %1086 = vmatprep.subr.mxu0 %v565
      %1087 = vmatpush2.msra.mxu0 %v564
      %1088 = vmatprep.subr.mxu0 %v558
      %1089 = vmatpush2.msra.mxu0 %v557
      %1090 = vmatprep.subr.mxu0 %v551
      %1091 = vmatpush2.msra.mxu0 %v550
      %1092 = vmatprep.subr.mxu0 %v544
      %1093 = vmatpush2.msra.mxu0 %v543
      %1094 = vmatprep.subr.mxu0 %v537
      %1095 = vmatpush2.msra.mxu0 %v536
      %1096 = vmatprep.subr.mxu0 %v530
      %1097 = vmatpush2.msra.mxu0 %v529
      %1098 = vmatprep.subr.mxu0 %v523
      %1099 = vmatpush2.msra.mxu0 %v522
      %1100 = vmatprep.subr.mxu0 %v516
      %1101 = vmatpush2.msra.mxu0 %v515
      %1102 = vmatprep.subr.mxu0 %v509
      %1103 = vmatpush2.msra.mxu0 %v508
      %1104 = vmatprep.subr.mxu0 %v502
      %1105 = vmatpush2.msra.mxu0 %v501
      %1106 = vmatprep.subr.mxu0 %v495
      %1107 = vmatpush2.msra.mxu0 %v494
      %1108 = vmatprep.subr.mxu0 %v488
      %1109 = vmatpush2.msra.mxu0 %v487
      %1110 = vmatprep.mubr.f32.mxu0 %v310
      %1111 = vmatmul.mubr.f32.gmra.mxu0 %v309
      %v1112 = vpop.f32.mrf.mxu0
      %v1113 = vadd.f32 %v632, %v1112
      %v1114 = vpop.f32.mrf.mxu0
      %v1115 = vadd.f32 %v632, %v1114
      %1116 = vmatprep.mubr.f32.mxu0 %v312
      %1117 = vmatmul.mubr.f32.gmra.mxu0 %v311
      %v1118 = vpop.f32.mrf.mxu0
      %v1119 = vadd.f32 %v637, %v1118
      %v1120 = vpop.f32.mrf.mxu0
      %v1121 = vadd.f32 %v637, %v1120
      %1122 = vmatprep.mubr.f32.mxu0 %v314
      %1123 = vmatmul.mubr.f32.gmra.mxu0 %v313
      %v1124 = vpop.f32.mrf.mxu0
      %v1125 = vadd.f32 %v642, %v1124
      %v1126 = vpop.f32.mrf.mxu0
      %v1127 = vadd.f32 %v642, %v1126
      %1128 = vmatprep.mubr.f32.mxu0 %v316
      %1129 = vmatmul.mubr.f32.gmra.mxu0 %v315
      %v1130 = vpop.f32.mrf.mxu0
      %v1131 = vadd.f32 %v647, %v1130
      %v1132 = vpop.f32.mrf.mxu0
      %v1133 = vadd.f32 %v647, %v1132
      %1134 = vmatprep.mubr.f32.mxu0 %v318
      %1135 = vmatmul.mubr.f32.gmra.mxu0 %v317
      %v1136 = vpop.f32.mrf.mxu0
      %v1137 = vadd.f32 %v652, %v1136
      %v1138 = vpop.f32.mrf.mxu0
      %v1139 = vadd.f32 %v652, %v1138
      %1140 = vmatprep.mubr.f32.mxu0 %v320
      %1141 = vmatmul.mubr.f32.gmra.mxu0 %v319
      %v1142 = vpop.f32.mrf.mxu0
      %v1143 = vadd.f32 %v657, %v1142
      %v1144 = vpop.f32.mrf.mxu0
      %v1145 = vadd.f32 %v657, %v1144
      %1146 = vmatprep.mubr.f32.mxu0 %v322
      %1147 = vmatmul.mubr.f32.gmra.mxu0 %v321
      %v1148 = vpop.f32.mrf.mxu0
      %v1149 = vadd.f32 %v662, %v1148
      %v1150 = vpop.f32.mrf.mxu0
      %v1151 = vadd.f32 %v662, %v1150
      %1152 = vmatprep.mubr.f32.mxu0 %v324
      %1153 = vmatmul.mubr.f32.gmra.mxu0 %v323
      %v1154 = vpop.f32.mrf.mxu0
      %v1155 = vadd.f32 %v667, %v1154
      %v1156 = vpop.f32.mrf.mxu0
      %v1157 = vadd.f32 %v667, %v1156
      %1158 = vmatprep.mubr.f32.mxu0 %v326
      %1159 = vmatmul.mubr.f32.gmra.mxu0 %v325
      %v1160 = vpop.f32.mrf.mxu0
      %v1161 = vadd.f32 %v672, %v1160
      %v1162 = vpop.f32.mrf.mxu0
      %v1163 = vadd.f32 %v672, %v1162
      %1164 = vmatprep.mubr.f32.mxu0 %v328
      %1165 = vmatmul.mubr.f32.gmra.mxu0 %v327
      %v1166 = vpop.f32.mrf.mxu0
      %v1167 = vadd.f32 %v677, %v1166
      %v1168 = vpop.f32.mrf.mxu0
      %v1169 = vadd.f32 %v677, %v1168
      %1170 = vmatprep.mubr.f32.mxu0 %v330
      %1171 = vmatmul.mubr.f32.gmra.mxu0 %v329
      %v1172 = vpop.f32.mrf.mxu0
      %v1173 = vadd.f32 %v682, %v1172
      %v1174 = vpop.f32.mrf.mxu0
      %v1175 = vadd.f32 %v682, %v1174
      %1176 = vmatprep.mubr.f32.mxu0 %v332
      %1177 = vmatmul.mubr.f32.gmra.mxu0 %v331
      %v1178 = vpop.f32.mrf.mxu0
      %v1179 = vadd.f32 %v687, %v1178
      %v1180 = vpop.f32.mrf.mxu0
      %v1181 = vadd.f32 %v687, %v1180
      %1182 = vmatprep.mubr.f32.mxu0 %v334
      %1183 = vmatmul.mubr.f32.gmra.mxu0 %v333
      %v1184 = vpop.f32.mrf.mxu0
      %v1185 = vadd.f32 %v692, %v1184
      %v1186 = vpop.f32.mrf.mxu0
      %v1187 = vadd.f32 %v692, %v1186
      %1188 = vmatprep.mubr.f32.mxu0 %v336
      %1189 = vmatmul.mubr.f32.gmra.mxu0 %v335
      %v1190 = vpop.f32.mrf.mxu0
      %v1191 = vadd.f32 %v697, %v1190
      %v1192 = vpop.f32.mrf.mxu0
      %v1193 = vadd.f32 %v697, %v1192
      %1194 = vmatprep.mubr.f32.mxu0 %v338
      %1195 = vmatmul.mubr.f32.gmra.mxu0 %v337
      %v1196 = vpop.f32.mrf.mxu0
      %v1197 = vadd.f32 %v702, %v1196
      %v1198 = vpop.f32.mrf.mxu0
      %v1199 = vadd.f32 %v702, %v1198
      %1200 = vmatprep.mubr.f32.mxu0 %v340
      %1201 = vmatmul.mubr.f32.gmra.mxu0 %v339
      %v1202 = vpop.f32.mrf.mxu0
      %v1203 = vadd.f32 %v707, %v1202
      %v1204 = vpop.f32.mrf.mxu0
      %v1205 = vadd.f32 %v707, %v1204
      %1206 = vmatprep.mubr.f32.mxu0 %v342
      %1207 = vmatmul.mubr.f32.gmra.mxu0 %v341
      %v1208 = vpop.f32.mrf.mxu0
      %v1209 = vadd.f32 %v712, %v1208
      %v1210 = vpop.f32.mrf.mxu0
      %v1211 = vadd.f32 %v712, %v1210
      %1212 = vmatprep.mubr.f32.mxu0 %v344
      %1213 = vmatmul.mubr.f32.gmra.mxu0 %v343
      %v1214 = vpop.f32.mrf.mxu0
      %v1215 = vadd.f32 %v717, %v1214
      %v1216 = vpop.f32.mrf.mxu0
      %v1217 = vadd.f32 %v717, %v1216
      %1218 = vmatprep.mubr.f32.mxu0 %v346
      %1219 = vmatmul.mubr.f32.gmra.mxu0 %v345
      %v1220 = vpop.f32.mrf.mxu0
      %v1221 = vadd.f32 %v722, %v1220
      %v1222 = vpop.f32.mrf.mxu0
      %v1223 = vadd.f32 %v722, %v1222
      %1224 = vmatprep.mubr.f32.mxu0 %v348
      %1225 = vmatmul.mubr.f32.gmra.mxu0 %v347
      %v1226 = vpop.f32.mrf.mxu0
      %v1227 = vadd.f32 %v727, %v1226
      %v1228 = vpop.f32.mrf.mxu0
      %v1229 = vadd.f32 %v727, %v1228
      %1230 = vmatprep.mubr.f32.mxu0 %v350
      %1231 = vmatmul.mubr.f32.gmra.mxu0 %v349
      %v1232 = vpop.f32.mrf.mxu0
      %v1233 = vadd.f32 %v732, %v1232
      %v1234 = vpop.f32.mrf.mxu0
      %v1235 = vadd.f32 %v732, %v1234
      %1236 = vmatprep.mubr.f32.mxu0 %v352
      %1237 = vmatmul.mubr.f32.gmra.mxu0 %v351
      %v1238 = vpop.f32.mrf.mxu0
      %v1239 = vadd.f32 %v737, %v1238
      %v1240 = vpop.f32.mrf.mxu0
      %v1241 = vadd.f32 %v737, %v1240
      %1242 = vmatprep.mubr.f32.mxu0 %v354
      %1243 = vmatmul.mubr.f32.gmra.mxu0 %v353
      %v1244 = vpop.f32.mrf.mxu0
      %v1245 = vadd.f32 %v742, %v1244
      %v1246 = vpop.f32.mrf.mxu0
      %v1247 = vadd.f32 %v742, %v1246
      %1248 = vmatprep.mubr.f32.mxu0 %v356
      %1249 = vmatmul.mubr.f32.gmra.mxu0 %v355
      %v1250 = vpop.f32.mrf.mxu0
      %v1251 = vadd.f32 %v747, %v1250
      %v1252 = vpop.f32.mrf.mxu0
      %v1253 = vadd.f32 %v747, %v1252
      %1254 = vmatprep.mubr.f32.mxu0 %v358
      %1255 = vmatmul.mubr.f32.gmra.mxu0 %v357
      %v1256 = vpop.f32.mrf.mxu0
      %v1257 = vadd.f32 %v752, %v1256
      %v1258 = vpop.f32.mrf.mxu0
      %v1259 = vadd.f32 %v752, %v1258
      %1260 = vmatprep.mubr.f32.mxu0 %v360
      %1261 = vmatmul.mubr.f32.gmra.mxu0 %v359
      %v1262 = vpop.f32.mrf.mxu0
      %v1263 = vadd.f32 %v757, %v1262
      %v1264 = vpop.f32.mrf.mxu0
      %v1265 = vadd.f32 %v757, %v1264
      %1266 = vmatprep.mubr.f32.mxu0 %v362
      %1267 = vmatmul.mubr.f32.gmra.mxu0 %v361
      %v1268 = vpop.f32.mrf.mxu0
      %v1269 = vadd.f32 %v762, %v1268
      %v1270 = vpop.f32.mrf.mxu0
      %v1271 = vadd.f32 %v762, %v1270
      %1272 = vmatprep.mubr.f32.mxu0 %v364
      %1273 = vmatmul.mubr.f32.gmra.mxu0 %v363
      %v1274 = vpop.f32.mrf.mxu0
      %v1275 = vadd.f32 %v767, %v1274
      %v1276 = vpop.f32.mrf.mxu0
      %v1277 = vadd.f32 %v767, %v1276
      %1278 = vmatprep.mubr.f32.mxu0 %v366
      %1279 = vmatmul.mubr.f32.gmra.mxu0 %v365
      %v1280 = vpop.f32.mrf.mxu0
      %v1281 = vadd.f32 %v772, %v1280
      %v1282 = vpop.f32.mrf.mxu0
      %v1283 = vadd.f32 %v772, %v1282
      %1284 = vmatprep.mubr.f32.mxu0 %v368
      %1285 = vmatmul.mubr.f32.gmra.mxu0 %v367
      %v1286 = vpop.f32.mrf.mxu0
      %v1287 = vadd.f32 %v777, %v1286
      %v1288 = vpop.f32.mrf.mxu0
      %v1289 = vadd.f32 %v777, %v1288
      %1290 = vmatprep.mubr.f32.mxu0 %v370
      %1291 = vmatmul.mubr.f32.gmra.mxu0 %v369
      %v1292 = vpop.f32.mrf.mxu0
      %v1293 = vadd.f32 %v782, %v1292
      %v1294 = vpop.f32.mrf.mxu0
      %v1295 = vadd.f32 %v782, %v1294
      %1296 = vmatprep.mubr.f32.mxu0 %v372
      %1297 = vmatmul.mubr.f32.gmra.mxu0 %v371
      %v1298 = vpop.f32.mrf.mxu0
      %v1299 = vadd.f32 %v787, %v1298
      %v1300 = vpop.f32.mrf.mxu0
      %v1301 = vadd.f32 %v787, %v1300
      %1302 = vdwg.mxu0
      %1303 = vmatprep.subr.mxu0 %v483
      %1304 = vmatpush1.msra.mxu0 %v482
      %1305 = vmatprep.subr.mxu0 %v476
      %1306 = vmatpush1.msra.mxu0 %v475
      %1307 = vmatprep.subr.mxu0 %v469
      %1308 = vmatpush1.msra.mxu0 %v468
      %1309 = vmatprep.subr.mxu0 %v462
      %1310 = vmatpush1.msra.mxu0 %v461
      %1311 = vmatprep.subr.mxu0 %v455
      %1312 = vmatpush1.msra.mxu0 %v454
      %1313 = vmatprep.subr.mxu0 %v448
      %1314 = vmatpush1.msra.mxu0 %v447
      %1315 = vmatprep.subr.mxu0 %v441
      %1316 = vmatpush1.msra.mxu0 %v440
      %1317 = vmatprep.subr.mxu0 %v434
      %1318 = vmatpush1.msra.mxu0 %v433
      %1319 = vmatprep.subr.mxu0 %v427
      %1320 = vmatpush1.msra.mxu0 %v426
      %1321 = vmatprep.subr.mxu0 %v420
      %1322 = vmatpush1.msra.mxu0 %v419
      %1323 = vmatprep.subr.mxu0 %v413
      %1324 = vmatpush1.msra.mxu0 %v412
      %1325 = vmatprep.subr.mxu0 %v406
      %1326 = vmatpush1.msra.mxu0 %v405
      %1327 = vmatprep.subr.mxu0 %v399
      %1328 = vmatpush1.msra.mxu0 %v398
      %1329 = vmatprep.subr.mxu0 %v392
      %1330 = vmatpush1.msra.mxu0 %v391
      %1331 = vmatprep.subr.mxu0 %v385
      %1332 = vmatpush1.msra.mxu0 %v384
      %1333 = vmatprep.subr.mxu0 %v378
      %1334 = vmatpush1.msra.mxu0 %v377
      %1335 = vmatprep.subr.mxu0 %v595
      %1336 = vmatpush2.msra.mxu0 %v594
      %1337 = vmatprep.subr.mxu0 %v588
      %1338 = vmatpush2.msra.mxu0 %v587
      %1339 = vmatprep.subr.mxu0 %v581
      %1340 = vmatpush2.msra.mxu0 %v580
      %1341 = vmatprep.subr.mxu0 %v574
      %1342 = vmatpush2.msra.mxu0 %v573
      %1343 = vmatprep.subr.mxu0 %v567
      %1344 = vmatpush2.msra.mxu0 %v566
      %1345 = vmatprep.subr.mxu0 %v560
      %1346 = vmatpush2.msra.mxu0 %v559
      %1347 = vmatprep.subr.mxu0 %v553
      %1348 = vmatpush2.msra.mxu0 %v552
      %1349 = vmatprep.subr.mxu0 %v546
      %1350 = vmatpush2.msra.mxu0 %v545
      %1351 = vmatprep.subr.mxu0 %v539
      %1352 = vmatpush2.msra.mxu0 %v538
      %1353 = vmatprep.subr.mxu0 %v532
      %1354 = vmatpush2.msra.mxu0 %v531
      %1355 = vmatprep.subr.mxu0 %v525
      %1356 = vmatpush2.msra.mxu0 %v524
      %1357 = vmatprep.subr.mxu0 %v518
      %1358 = vmatpush2.msra.mxu0 %v517
      %1359 = vmatprep.subr.mxu0 %v511
      %1360 = vmatpush2.msra.mxu0 %v510
      %1361 = vmatprep.subr.mxu0 %v504
      %1362 = vmatpush2.msra.mxu0 %v503
      %1363 = vmatprep.subr.mxu0 %v497
      %1364 = vmatpush2.msra.mxu0 %v496
      %1365 = vmatprep.subr.mxu0 %v490
      %1366 = vmatpush2.msra.mxu0 %v489
      %1367 = vmatprep.mubr.f32.mxu0 %v310
      %1368 = vmatmul.mubr.f32.gmra.mxu0 %v309
      %v1369 = vpop.f32.mrf.mxu0
      %v1370 = vadd.f32 %v632, %v1369
      %v1371 = vpop.f32.mrf.mxu0
      %v1372 = vadd.f32 %v632, %v1371
      %1373 = vmatprep.mubr.f32.mxu0 %v312
      %1374 = vmatmul.mubr.f32.gmra.mxu0 %v311
      %v1375 = vpop.f32.mrf.mxu0
      %v1376 = vadd.f32 %v637, %v1375
      %v1377 = vpop.f32.mrf.mxu0
      %v1378 = vadd.f32 %v637, %v1377
      %1379 = vmatprep.mubr.f32.mxu0 %v314
      %1380 = vmatmul.mubr.f32.gmra.mxu0 %v313
      %v1381 = vpop.f32.mrf.mxu0
      %v1382 = vadd.f32 %v642, %v1381
      %v1383 = vpop.f32.mrf.mxu0
      %v1384 = vadd.f32 %v642, %v1383
      %1385 = vmatprep.mubr.f32.mxu0 %v316
      %1386 = vmatmul.mubr.f32.gmra.mxu0 %v315
      %v1387 = vpop.f32.mrf.mxu0
      %v1388 = vadd.f32 %v647, %v1387
      %v1389 = vpop.f32.mrf.mxu0
      %v1390 = vadd.f32 %v647, %v1389
      %1391 = vmatprep.mubr.f32.mxu0 %v318
      %1392 = vmatmul.mubr.f32.gmra.mxu0 %v317
      %v1393 = vpop.f32.mrf.mxu0
      %v1394 = vadd.f32 %v652, %v1393
      %v1395 = vpop.f32.mrf.mxu0
      %v1396 = vadd.f32 %v652, %v1395
      %1397 = vmatprep.mubr.f32.mxu0 %v320
      %1398 = vmatmul.mubr.f32.gmra.mxu0 %v319
      %v1399 = vpop.f32.mrf.mxu0
      %v1400 = vadd.f32 %v657, %v1399
      %v1401 = vpop.f32.mrf.mxu0
      %v1402 = vadd.f32 %v657, %v1401
      %1403 = vmatprep.mubr.f32.mxu0 %v322
      %1404 = vmatmul.mubr.f32.gmra.mxu0 %v321
      %v1405 = vpop.f32.mrf.mxu0
      %v1406 = vadd.f32 %v662, %v1405
      %v1407 = vpop.f32.mrf.mxu0
      %v1408 = vadd.f32 %v662, %v1407
      %1409 = vmatprep.mubr.f32.mxu0 %v324
      %1410 = vmatmul.mubr.f32.gmra.mxu0 %v323
      %v1411 = vpop.f32.mrf.mxu0
      %v1412 = vadd.f32 %v667, %v1411
      %v1413 = vpop.f32.mrf.mxu0
      %v1414 = vadd.f32 %v667, %v1413
      %1415 = vmatprep.mubr.f32.mxu0 %v326
      %1416 = vmatmul.mubr.f32.gmra.mxu0 %v325
      %v1417 = vpop.f32.mrf.mxu0
      %v1418 = vadd.f32 %v672, %v1417
      %v1419 = vpop.f32.mrf.mxu0
      %v1420 = vadd.f32 %v672, %v1419
      %1421 = vmatprep.mubr.f32.mxu0 %v328
      %1422 = vmatmul.mubr.f32.gmra.mxu0 %v327
      %v1423 = vpop.f32.mrf.mxu0
      %v1424 = vadd.f32 %v677, %v1423
      %v1425 = vpop.f32.mrf.mxu0
      %v1426 = vadd.f32 %v677, %v1425
      %1427 = vmatprep.mubr.f32.mxu0 %v330
      %1428 = vmatmul.mubr.f32.gmra.mxu0 %v329
      %v1429 = vpop.f32.mrf.mxu0
      %v1430 = vadd.f32 %v682, %v1429
      %v1431 = vpop.f32.mrf.mxu0
      %v1432 = vadd.f32 %v682, %v1431
      %1433 = vmatprep.mubr.f32.mxu0 %v332
      %1434 = vmatmul.mubr.f32.gmra.mxu0 %v331
      %v1435 = vpop.f32.mrf.mxu0
      %v1436 = vadd.f32 %v687, %v1435
      %v1437 = vpop.f32.mrf.mxu0
      %v1438 = vadd.f32 %v687, %v1437
      %1439 = vmatprep.mubr.f32.mxu0 %v334
      %1440 = vmatmul.mubr.f32.gmra.mxu0 %v333
      %v1441 = vpop.f32.mrf.mxu0
      %v1442 = vadd.f32 %v692, %v1441
      %v1443 = vpop.f32.mrf.mxu0
      %v1444 = vadd.f32 %v692, %v1443
      %1445 = vmatprep.mubr.f32.mxu0 %v336
      %1446 = vmatmul.mubr.f32.gmra.mxu0 %v335
      %v1447 = vpop.f32.mrf.mxu0
      %v1448 = vadd.f32 %v697, %v1447
      %v1449 = vpop.f32.mrf.mxu0
      %v1450 = vadd.f32 %v697, %v1449
      %1451 = vmatprep.mubr.f32.mxu0 %v338
      %1452 = vmatmul.mubr.f32.gmra.mxu0 %v337
      %v1453 = vpop.f32.mrf.mxu0
      %v1454 = vadd.f32 %v702, %v1453
      %v1455 = vpop.f32.mrf.mxu0
      %v1456 = vadd.f32 %v702, %v1455
      %1457 = vmatprep.mubr.f32.mxu0 %v340
      %1458 = vmatmul.mubr.f32.gmra.mxu0 %v339
      %v1459 = vpop.f32.mrf.mxu0
      %v1460 = vadd.f32 %v707, %v1459
      %v1461 = vpop.f32.mrf.mxu0
      %v1462 = vadd.f32 %v707, %v1461
      %1463 = vmatprep.mubr.f32.mxu0 %v342
      %1464 = vmatmul.mubr.f32.gmra.mxu0 %v341
      %v1465 = vpop.f32.mrf.mxu0
      %v1466 = vadd.f32 %v712, %v1465
      %v1467 = vpop.f32.mrf.mxu0
      %v1468 = vadd.f32 %v712, %v1467
      %1469 = vmatprep.mubr.f32.mxu0 %v344
      %1470 = vmatmul.mubr.f32.gmra.mxu0 %v343
      %v1471 = vpop.f32.mrf.mxu0
      %v1472 = vadd.f32 %v717, %v1471
      %v1473 = vpop.f32.mrf.mxu0
      %v1474 = vadd.f32 %v717, %v1473
      %1475 = vmatprep.mubr.f32.mxu0 %v346
      %1476 = vmatmul.mubr.f32.gmra.mxu0 %v345
      %v1477 = vpop.f32.mrf.mxu0
      %v1478 = vadd.f32 %v722, %v1477
      %v1479 = vpop.f32.mrf.mxu0
      %v1480 = vadd.f32 %v722, %v1479
      %1481 = vmatprep.mubr.f32.mxu0 %v348
      %1482 = vmatmul.mubr.f32.gmra.mxu0 %v347
      %v1483 = vpop.f32.mrf.mxu0
      %v1484 = vadd.f32 %v727, %v1483
      %v1485 = vpop.f32.mrf.mxu0
      %v1486 = vadd.f32 %v727, %v1485
      %1487 = vmatprep.mubr.f32.mxu0 %v350
      %1488 = vmatmul.mubr.f32.gmra.mxu0 %v349
      %v1489 = vpop.f32.mrf.mxu0
      %v1490 = vadd.f32 %v732, %v1489
      %v1491 = vpop.f32.mrf.mxu0
      %v1492 = vadd.f32 %v732, %v1491
      %1493 = vmatprep.mubr.f32.mxu0 %v352
      %1494 = vmatmul.mubr.f32.gmra.mxu0 %v351
      %v1495 = vpop.f32.mrf.mxu0
      %v1496 = vadd.f32 %v737, %v1495
      %v1497 = vpop.f32.mrf.mxu0
      %v1498 = vadd.f32 %v737, %v1497
      %1499 = vmatprep.mubr.f32.mxu0 %v354
      %1500 = vmatmul.mubr.f32.gmra.mxu0 %v353
      %v1501 = vpop.f32.mrf.mxu0
      %v1502 = vadd.f32 %v742, %v1501
      %v1503 = vpop.f32.mrf.mxu0
      %v1504 = vadd.f32 %v742, %v1503
      %1505 = vmatprep.mubr.f32.mxu0 %v356
      %1506 = vmatmul.mubr.f32.gmra.mxu0 %v355
      %v1507 = vpop.f32.mrf.mxu0
      %v1508 = vadd.f32 %v747, %v1507
      %v1509 = vpop.f32.mrf.mxu0
      %v1510 = vadd.f32 %v747, %v1509
      %1511 = vmatprep.mubr.f32.mxu0 %v358
      %1512 = vmatmul.mubr.f32.gmra.mxu0 %v357
      %v1513 = vpop.f32.mrf.mxu0
      %v1514 = vadd.f32 %v752, %v1513
      %v1515 = vpop.f32.mrf.mxu0
      %v1516 = vadd.f32 %v752, %v1515
      %1517 = vmatprep.mubr.f32.mxu0 %v360
      %1518 = vmatmul.mubr.f32.gmra.mxu0 %v359
      %v1519 = vpop.f32.mrf.mxu0
      %v1520 = vadd.f32 %v757, %v1519
      %v1521 = vpop.f32.mrf.mxu0
      %v1522 = vadd.f32 %v757, %v1521
      %1523 = vmatprep.mubr.f32.mxu0 %v362
      %1524 = vmatmul.mubr.f32.gmra.mxu0 %v361
      %v1525 = vpop.f32.mrf.mxu0
      %v1526 = vadd.f32 %v762, %v1525
      %v1527 = vpop.f32.mrf.mxu0
      %v1528 = vadd.f32 %v762, %v1527
      %1529 = vmatprep.mubr.f32.mxu0 %v364
      %1530 = vmatmul.mubr.f32.gmra.mxu0 %v363
      %v1531 = vpop.f32.mrf.mxu0
      %v1532 = vadd.f32 %v767, %v1531
      %v1533 = vpop.f32.mrf.mxu0
      %v1534 = vadd.f32 %v767, %v1533
      %1535 = vmatprep.mubr.f32.mxu0 %v366
      %1536 = vmatmul.mubr.f32.gmra.mxu0 %v365
      %v1537 = vpop.f32.mrf.mxu0
      %v1538 = vadd.f32 %v772, %v1537
      %v1539 = vpop.f32.mrf.mxu0
      %v1540 = vadd.f32 %v772, %v1539
      %1541 = vmatprep.mubr.f32.mxu0 %v368
      %1542 = vmatmul.mubr.f32.gmra.mxu0 %v367
      %v1543 = vpop.f32.mrf.mxu0
      %v1544 = vadd.f32 %v777, %v1543
      %v1545 = vpop.f32.mrf.mxu0
      %v1546 = vadd.f32 %v777, %v1545
      %1547 = vmatprep.mubr.f32.mxu0 %v370
      %1548 = vmatmul.mubr.f32.gmra.mxu0 %v369
      %v1549 = vpop.f32.mrf.mxu0
      %v1550 = vadd.f32 %v782, %v1549
      %v1551 = vpop.f32.mrf.mxu0
      %v1552 = vadd.f32 %v782, %v1551
      %1553 = vmatprep.mubr.f32.mxu0 %v372
      %1554 = vmatmul.mubr.f32.gmra.mxu0 %v371
      %v1555 = vpop.f32.mrf.mxu0
      %v1556 = vadd.f32 %v787, %v1555
      %v1557 = vpop.f32.mrf.mxu0
      %v1558 = vadd.f32 %v787, %v1557
      %1559 = vdwg.mxu0
      %1560 = vmatprep.subr.mxu0 0.0
      %1561 = vmatpush1.msra.mxu0 %v484
      %1562 = vmatprep.subr.mxu0 0.0
      %1563 = vmatpush1.msra.mxu0 %v477
      %1564 = vmatprep.subr.mxu0 0.0
      %1565 = vmatpush1.msra.mxu0 %v470
      %1566 = vmatprep.subr.mxu0 0.0
      %1567 = vmatpush1.msra.mxu0 %v463
      %1568 = vmatprep.subr.mxu0 0.0
      %1569 = vmatpush1.msra.mxu0 %v456
      %1570 = vmatprep.subr.mxu0 0.0
      %1571 = vmatpush1.msra.mxu0 %v449
      %1572 = vmatprep.subr.mxu0 0.0
      %1573 = vmatpush1.msra.mxu0 %v442
      %1574 = vmatprep.subr.mxu0 0.0
      %1575 = vmatpush1.msra.mxu0 %v435
      %1576 = vmatprep.subr.mxu0 0.0
      %1577 = vmatpush1.msra.mxu0 %v428
      %1578 = vmatprep.subr.mxu0 0.0
      %1579 = vmatpush1.msra.mxu0 %v421
      %1580 = vmatprep.subr.mxu0 0.0
      %1581 = vmatpush1.msra.mxu0 %v414
      %1582 = vmatprep.subr.mxu0 0.0
      %1583 = vmatpush1.msra.mxu0 %v407
      %1584 = vmatprep.subr.mxu0 0.0
      %1585 = vmatpush1.msra.mxu0 %v400
      %1586 = vmatprep.subr.mxu0 0.0
      %1587 = vmatpush1.msra.mxu0 %v393
      %1588 = vmatprep.subr.mxu0 0.0
      %1589 = vmatpush1.msra.mxu0 %v386
      %1590 = vmatprep.subr.mxu0 0.0
      %1591 = vmatpush1.msra.mxu0 %v379
      %1592 = vmatprep.subr.mxu0 0.0
      %1593 = vmatpush2.msra.mxu0 %v596
      %1594 = vmatprep.subr.mxu0 0.0
      %1595 = vmatpush2.msra.mxu0 %v589
      %1596 = vmatprep.subr.mxu0 0.0
      %1597 = vmatpush2.msra.mxu0 %v582
      %1598 = vmatprep.subr.mxu0 0.0
      %1599 = vmatpush2.msra.mxu0 %v575
      %1600 = vmatprep.subr.mxu0 0.0
      %1601 = vmatpush2.msra.mxu0 %v568
      %1602 = vmatprep.subr.mxu0 0.0
      %1603 = vmatpush2.msra.mxu0 %v561
      %1604 = vmatprep.subr.mxu0 0.0
      %1605 = vmatpush2.msra.mxu0 %v554
      %1606 = vmatprep.subr.mxu0 0.0
      %1607 = vmatpush2.msra.mxu0 %v547
      %1608 = vmatprep.subr.mxu0 0.0
      %1609 = vmatpush2.msra.mxu0 %v540
      %1610 = vmatprep.subr.mxu0 0.0
      %1611 = vmatpush2.msra.mxu0 %v533
      %1612 = vmatprep.subr.mxu0 0.0
      %1613 = vmatpush2.msra.mxu0 %v526
      %1614 = vmatprep.subr.mxu0 0.0
      %1615 = vmatpush2.msra.mxu0 %v519
      %1616 = vmatprep.subr.mxu0 0.0
      %1617 = vmatpush2.msra.mxu0 %v512
      %1618 = vmatprep.subr.mxu0 0.0
      %1619 = vmatpush2.msra.mxu0 %v505
      %1620 = vmatprep.subr.mxu0 0.0
      %1621 = vmatpush2.msra.mxu0 %v498
      %1622 = vmatprep.subr.mxu0 0.0
      %1623 = vmatpush2.msra.mxu0 %v491
      %1624 = vmatprep.mubr.f32.mxu0 %v310
      %1625 = vmatmul.mubr.f32.gmra.mxu0 %v309
      %v1626 = vpop.f32.mrf.mxu0
      %v1627 = vadd.f32 %v632, %v1626
      %v1628 = vpop.f32.mrf.mxu0
      %1629 = vmatprep.mubr.f32.mxu0 %v312
      %1630 = vmatmul.mubr.f32.gmra.mxu0 %v311
      %v1631 = vpop.f32.mrf.mxu0
      %v1632 = vadd.f32 %v637, %v1631
      %v1633 = vpop.f32.mrf.mxu0
      %1634 = vmatprep.mubr.f32.mxu0 %v314
      %1635 = vmatmul.mubr.f32.gmra.mxu0 %v313
      %v1636 = vpop.f32.mrf.mxu0
      %v1637 = vadd.f32 %v642, %v1636
      %v1638 = vpop.f32.mrf.mxu0
      %1639 = vmatprep.mubr.f32.mxu0 %v316
      %1640 = vmatmul.mubr.f32.gmra.mxu0 %v315
      %v1641 = vpop.f32.mrf.mxu0
      %v1642 = vadd.f32 %v647, %v1641
      %v1643 = vpop.f32.mrf.mxu0
      %1644 = vmatprep.mubr.f32.mxu0 %v318
      %1645 = vmatmul.mubr.f32.gmra.mxu0 %v317
      %v1646 = vpop.f32.mrf.mxu0
      %v1647 = vadd.f32 %v652, %v1646
      %v1648 = vpop.f32.mrf.mxu0
      %1649 = vmatprep.mubr.f32.mxu0 %v320
      %1650 = vmatmul.mubr.f32.gmra.mxu0 %v319
      %v1651 = vpop.f32.mrf.mxu0
      %v1652 = vadd.f32 %v657, %v1651
      %v1653 = vpop.f32.mrf.mxu0
      %1654 = vmatprep.mubr.f32.mxu0 %v322
      %1655 = vmatmul.mubr.f32.gmra.mxu0 %v321
      %v1656 = vpop.f32.mrf.mxu0
      %v1657 = vadd.f32 %v662, %v1656
      %v1658 = vpop.f32.mrf.mxu0
      %1659 = vmatprep.mubr.f32.mxu0 %v324
      %1660 = vmatmul.mubr.f32.gmra.mxu0 %v323
      %v1661 = vpop.f32.mrf.mxu0
      %v1662 = vadd.f32 %v667, %v1661
      %v1663 = vpop.f32.mrf.mxu0
      %1664 = vmatprep.mubr.f32.mxu0 %v326
      %1665 = vmatmul.mubr.f32.gmra.mxu0 %v325
      %v1666 = vpop.f32.mrf.mxu0
      %v1667 = vadd.f32 %v672, %v1666
      %v1668 = vpop.f32.mrf.mxu0
      %1669 = vmatprep.mubr.f32.mxu0 %v328
      %1670 = vmatmul.mubr.f32.gmra.mxu0 %v327
      %v1671 = vpop.f32.mrf.mxu0
      %v1672 = vadd.f32 %v677, %v1671
      %v1673 = vpop.f32.mrf.mxu0
      %1674 = vmatprep.mubr.f32.mxu0 %v330
      %1675 = vmatmul.mubr.f32.gmra.mxu0 %v329
      %v1676 = vpop.f32.mrf.mxu0
      %v1677 = vadd.f32 %v682, %v1676
      %v1678 = vpop.f32.mrf.mxu0
      %1679 = vmatprep.mubr.f32.mxu0 %v332
      %1680 = vmatmul.mubr.f32.gmra.mxu0 %v331
      %v1681 = vpop.f32.mrf.mxu0
      %v1682 = vadd.f32 %v687, %v1681
      %v1683 = vpop.f32.mrf.mxu0
      %1684 = vmatprep.mubr.f32.mxu0 %v334
      %1685 = vmatmul.mubr.f32.gmra.mxu0 %v333
      %v1686 = vpop.f32.mrf.mxu0
      %v1687 = vadd.f32 %v692, %v1686
      %v1688 = vpop.f32.mrf.mxu0
      %1689 = vmatprep.mubr.f32.mxu0 %v336
      %1690 = vmatmul.mubr.f32.gmra.mxu0 %v335
      %v1691 = vpop.f32.mrf.mxu0
      %v1692 = vadd.f32 %v697, %v1691
      %v1693 = vpop.f32.mrf.mxu0
      %1694 = vmatprep.mubr.f32.mxu0 %v338
      %1695 = vmatmul.mubr.f32.gmra.mxu0 %v337
      %v1696 = vpop.f32.mrf.mxu0
      %v1697 = vadd.f32 %v702, %v1696
      %v1698 = vpop.f32.mrf.mxu0
      %1699 = vmatprep.mubr.f32.mxu0 %v340
      %1700 = vmatmul.mubr.f32.gmra.mxu0 %v339
      %v1701 = vpop.f32.mrf.mxu0
      %v1702 = vadd.f32 %v707, %v1701
      %v1703 = vpop.f32.mrf.mxu0
      %1704 = vmatprep.mubr.f32.mxu0 %v342
      %1705 = vmatmul.mubr.f32.gmra.mxu0 %v341
      %v1706 = vpop.f32.mrf.mxu0
      %v1707 = vadd.f32 %v712, %v1706
      %v1708 = vpop.f32.mrf.mxu0
      %1709 = vmatprep.mubr.f32.mxu0 %v344
      %1710 = vmatmul.mubr.f32.gmra.mxu0 %v343
      %v1711 = vpop.f32.mrf.mxu0
      %v1712 = vadd.f32 %v717, %v1711
      %v1713 = vpop.f32.mrf.mxu0
      %1714 = vmatprep.mubr.f32.mxu0 %v346
      %1715 = vmatmul.mubr.f32.gmra.mxu0 %v345
      %v1716 = vpop.f32.mrf.mxu0
      %v1717 = vadd.f32 %v722, %v1716
      %v1718 = vpop.f32.mrf.mxu0
      %1719 = vmatprep.mubr.f32.mxu0 %v348
      %1720 = vmatmul.mubr.f32.gmra.mxu0 %v347
      %v1721 = vpop.f32.mrf.mxu0
      %v1722 = vadd.f32 %v727, %v1721
      %v1723 = vpop.f32.mrf.mxu0
      %1724 = vmatprep.mubr.f32.mxu0 %v350
      %1725 = vmatmul.mubr.f32.gmra.mxu0 %v349
      %v1726 = vpop.f32.mrf.mxu0
      %v1727 = vadd.f32 %v732, %v1726
      %v1728 = vpop.f32.mrf.mxu0
      %1729 = vmatprep.mubr.f32.mxu0 %v352
      %1730 = vmatmul.mubr.f32.gmra.mxu0 %v351
      %v1731 = vpop.f32.mrf.mxu0
      %v1732 = vadd.f32 %v737, %v1731
      %v1733 = vpop.f32.mrf.mxu0
      %1734 = vmatprep.mubr.f32.mxu0 %v354
      %1735 = vmatmul.mubr.f32.gmra.mxu0 %v353
      %v1736 = vpop.f32.mrf.mxu0
      %v1737 = vadd.f32 %v742, %v1736
      %v1738 = vpop.f32.mrf.mxu0
      %1739 = vmatprep.mubr.f32.mxu0 %v356
      %1740 = vmatmul.mubr.f32.gmra.mxu0 %v355
      %v1741 = vpop.f32.mrf.mxu0
      %v1742 = vadd.f32 %v747, %v1741
      %v1743 = vpop.f32.mrf.mxu0
      %1744 = vmatprep.mubr.f32.mxu0 %v358
      %1745 = vmatmul.mubr.f32.gmra.mxu0 %v357
      %v1746 = vpop.f32.mrf.mxu0
      %v1747 = vadd.f32 %v752, %v1746
      %v1748 = vpop.f32.mrf.mxu0
      %1749 = vmatprep.mubr.f32.mxu0 %v360
      %1750 = vmatmul.mubr.f32.gmra.mxu0 %v359
      %v1751 = vpop.f32.mrf.mxu0
      %v1752 = vadd.f32 %v757, %v1751
      %v1753 = vpop.f32.mrf.mxu0
      %1754 = vmatprep.mubr.f32.mxu0 %v362
      %1755 = vmatmul.mubr.f32.gmra.mxu0 %v361
      %v1756 = vpop.f32.mrf.mxu0
      %v1757 = vadd.f32 %v762, %v1756
      %v1758 = vpop.f32.mrf.mxu0
      %1759 = vmatprep.mubr.f32.mxu0 %v364
      %1760 = vmatmul.mubr.f32.gmra.mxu0 %v363
      %v1761 = vpop.f32.mrf.mxu0
      %v1762 = vadd.f32 %v767, %v1761
      %v1763 = vpop.f32.mrf.mxu0
      %1764 = vmatprep.mubr.f32.mxu0 %v366
      %1765 = vmatmul.mubr.f32.gmra.mxu0 %v365
      %v1766 = vpop.f32.mrf.mxu0
      %v1767 = vadd.f32 %v772, %v1766
      %v1768 = vpop.f32.mrf.mxu0
      %1769 = vmatprep.mubr.f32.mxu0 %v368
      %1770 = vmatmul.mubr.f32.gmra.mxu0 %v367
      %v1771 = vpop.f32.mrf.mxu0
      %v1772 = vadd.f32 %v777, %v1771
      %v1773 = vpop.f32.mrf.mxu0
      %1774 = vmatprep.mubr.f32.mxu0 %v370
      %1775 = vmatmul.mubr.f32.gmra.mxu0 %v369
      %v1776 = vpop.f32.mrf.mxu0
      %v1777 = vadd.f32 %v782, %v1776
      %v1778 = vpop.f32.mrf.mxu0
      %1779 = vmatprep.mubr.f32.mxu0 %v372
      %1780 = vmatmul.mubr.f32.gmra.mxu0 %v371
      %v1781 = vpop.f32.mrf.mxu0
      %v1782 = vadd.f32 %v787, %v1781
      %v1783 = vpop.f32.mrf.mxu0
      %1784 = vdwg.mxu0
      %v1785 = vld [vmem:[%s296] sm:$0xff]
      %v1786 = vld [vmem:[%s296 + $0x8] sm:$0xff]
      %v1787 = vld [vmem:[%s296 + $0x10] sm:$0xff]
      %v1788 = vld [vmem:[%s296 + $0x18] sm:$0xff]
      %v1789 = vld [vmem:[%s296 + $0x20] sm:$0xff]
      %v1790 = vld [vmem:[%s296 + $0x28] sm:$0xff]
      %v1791 = vld [vmem:[%s296 + $0x30] sm:$0xff]
      %v1792 = vld [vmem:[%s296 + $0x38] sm:$0xff]
      %v1793 = vld [vmem:[%s296 + $0x40] sm:$0xff]
      %v1794 = vld [vmem:[%s296 + $0x48] sm:$0xff]
      %v1795 = vld [vmem:[%s296 + $0x50] sm:$0xff]
      %v1796 = vld [vmem:[%s296 + $0x58] sm:$0xff]
      %v1797 = vld [vmem:[%s296 + $0x60] sm:$0xff]
      %v1798 = vld [vmem:[%s296 + $0x68] sm:$0xff]
      %v1799 = vld [vmem:[%s296 + $0x70] sm:$0xff]
      %v1800 = vld [vmem:[%s296 + $0x78] sm:$0xff]
      %v1801 = vld [vmem:[%s296 + $0x80] sm:$0xff]
      %v1802 = vld [vmem:[%s296 + $0x88] sm:$0xff]
      %v1803 = vld [vmem:[%s296 + $0x90] sm:$0xff]
      %v1804 = vld [vmem:[%s296 + $0x98] sm:$0xff]
      %v1805 = vld [vmem:[%s296 + $0xa0] sm:$0xff]
      %v1806 = vld [vmem:[%s296 + $0xa8] sm:$0xff]
      %v1807 = vld [vmem:[%s296 + $0xb0] sm:$0xff]
      %v1808 = vld [vmem:[%s296 + $0xb8] sm:$0xff]
      %v1809 = vld [vmem:[%s296 + $0xc0] sm:$0xff]
      %v1810 = vld [vmem:[%s296 + $0xc8] sm:$0xff]
      %v1811 = vld [vmem:[%s296 + $0xd0] sm:$0xff]
      %v1812 = vld [vmem:[%s296 + $0xd8] sm:$0xff]
      %v1813 = vld [vmem:[%s296 + $0xe0] sm:$0xff]
      %v1814 = vld [vmem:[%s296 + $0xe8] sm:$0xff]
      %v1815 = vld [vmem:[%s296 + $0xf0] sm:$0xff]
      %v1816 = vld [vmem:[%s296 + $0xf8] sm:$0xff]
      %v1817 = vld [vmem:[%s296 + $0x100] sm:$0xff]
      %v1818 = vld [vmem:[%s296 + $0x108] sm:$0xff]
      %v1819 = vld [vmem:[%s296 + $0x110] sm:$0xff]
      %v1820 = vld [vmem:[%s296 + $0x118] sm:$0xff]
      %v1821 = vld [vmem:[%s296 + $0x120] sm:$0xff]
      %v1822 = vld [vmem:[%s296 + $0x128] sm:$0xff]
      %v1823 = vld [vmem:[%s296 + $0x130] sm:$0xff]
      %v1824 = vld [vmem:[%s296 + $0x138] sm:$0xff]
      %v1825 = vld [vmem:[%s296 + $0x140] sm:$0xff]
      %v1826 = vld [vmem:[%s296 + $0x148] sm:$0xff]
      %v1827 = vld [vmem:[%s296 + $0x150] sm:$0xff]
      %v1828 = vld [vmem:[%s296 + $0x158] sm:$0xff]
      %v1829 = vld [vmem:[%s296 + $0x160] sm:$0xff]
      %v1830 = vld [vmem:[%s296 + $0x168] sm:$0xff]
      %v1831 = vld [vmem:[%s296 + $0x170] sm:$0xff]
      %v1832 = vld [vmem:[%s296 + $0x178] sm:$0xff]
      %v1833 = vld [vmem:[%s296 + $0x180] sm:$0xff]
      %v1834 = vld [vmem:[%s296 + $0x188] sm:$0xff]
      %v1835 = vld [vmem:[%s296 + $0x190] sm:$0xff]
      %v1836 = vld [vmem:[%s296 + $0x198] sm:$0xff]
      %v1837 = vld [vmem:[%s296 + $0x1a0] sm:$0xff]
      %v1838 = vld [vmem:[%s296 + $0x1a8] sm:$0xff]
      %v1839 = vld [vmem:[%s296 + $0x1b0] sm:$0xff]
      %v1840 = vld [vmem:[%s296 + $0x1b8] sm:$0xff]
      %v1841 = vld [vmem:[%s296 + $0x1c0] sm:$0xff]
      %v1842 = vld [vmem:[%s296 + $0x1c8] sm:$0xff]
      %v1843 = vld [vmem:[%s296 + $0x1d0] sm:$0xff]
      %v1844 = vld [vmem:[%s296 + $0x1d8] sm:$0xff]
      %v1845 = vld [vmem:[%s296 + $0x1e0] sm:$0xff]
      %v1846 = vld [vmem:[%s296 + $0x1e8] sm:$0xff]
      %v1847 = vld [vmem:[%s296 + $0x1f0] sm:$0xff]
      %v1848 = vld [vmem:[%s296 + $0x1f8] sm:$0xff]
      %v1849 = vld [vmem:[%s296 + $0x200] sm:$0xff]
      %v1850 = vld [vmem:[%s296 + $0x208] sm:$0xff]
      %v1851 = vld [vmem:[%s296 + $0x210] sm:$0xff]
      %v1852 = vld [vmem:[%s296 + $0x218] sm:$0xff]
      %v1853 = vld [vmem:[%s296 + $0x220] sm:$0xff]
      %v1854 = vld [vmem:[%s296 + $0x228] sm:$0xff]
      %v1855 = vld [vmem:[%s296 + $0x230] sm:$0xff]
      %v1856 = vld [vmem:[%s296 + $0x238] sm:$0xff]
      %v1857 = vld [vmem:[%s296 + $0x240] sm:$0xff]
      %v1858 = vld [vmem:[%s296 + $0x248] sm:$0xff]
      %v1859 = vld [vmem:[%s296 + $0x250] sm:$0xff]
      %v1860 = vld [vmem:[%s296 + $0x258] sm:$0xff]
      %v1861 = vld [vmem:[%s296 + $0x260] sm:$0xff]
      %v1862 = vld [vmem:[%s296 + $0x268] sm:$0xff]
      %v1863 = vld [vmem:[%s296 + $0x270] sm:$0xff]
      %v1864 = vld [vmem:[%s296 + $0x278] sm:$0xff]
      %v1865 = vld [vmem:[%s296 + $0x280] sm:$0xff]
      %v1866 = vld [vmem:[%s296 + $0x288] sm:$0xff]
      %v1867 = vld [vmem:[%s296 + $0x290] sm:$0xff]
      %v1868 = vld [vmem:[%s296 + $0x298] sm:$0xff]
      %v1869 = vld [vmem:[%s296 + $0x2a0] sm:$0xff]
      %v1870 = vld [vmem:[%s296 + $0x2a8] sm:$0xff]
      %v1871 = vld [vmem:[%s296 + $0x2b0] sm:$0xff]
      %v1872 = vld [vmem:[%s296 + $0x2b8] sm:$0xff]
      %v1873 = vld [vmem:[%s296 + $0x2c0] sm:$0xff]
      %v1874 = vld [vmem:[%s296 + $0x2c8] sm:$0xff]
      %v1875 = vld [vmem:[%s296 + $0x2d0] sm:$0xff]
      %v1876 = vld [vmem:[%s296 + $0x2d8] sm:$0xff]
      %v1877 = vld [vmem:[%s296 + $0x2e0] sm:$0xff]
      %v1878 = vld [vmem:[%s296 + $0x2e8] sm:$0xff]
      %v1879 = vld [vmem:[%s296 + $0x2f0] sm:$0xff]
      %v1880 = vld [vmem:[%s296 + $0x2f8] sm:$0xff]
      %v1881 = vld [vmem:[%s296 + $0x300] sm:$0xff]
      %v1882 = vld [vmem:[%s296 + $0x308] sm:$0xff]
      %v1883 = vld [vmem:[%s296 + $0x310] sm:$0xff]
      %v1884 = vld [vmem:[%s296 + $0x318] sm:$0xff]
      %v1885 = vld [vmem:[%s296 + $0x320] sm:$0xff]
      %v1886 = vld [vmem:[%s296 + $0x328] sm:$0xff]
      %v1887 = vld [vmem:[%s296 + $0x330] sm:$0xff]
      %v1888 = vld [vmem:[%s296 + $0x338] sm:$0xff]
      %v1889 = vld [vmem:[%s296 + $0x340] sm:$0xff]
      %v1890 = vld [vmem:[%s296 + $0x348] sm:$0xff]
      %v1891 = vld [vmem:[%s296 + $0x350] sm:$0xff]
      %v1892 = vld [vmem:[%s296 + $0x358] sm:$0xff]
      %v1893 = vld [vmem:[%s296 + $0x360] sm:$0xff]
      %v1894 = vld [vmem:[%s296 + $0x368] sm:$0xff]
      %v1895 = vld [vmem:[%s296 + $0x370] sm:$0xff]
      %v1896 = vld [vmem:[%s296 + $0x378] sm:$0xff]
      %v1897 = vld [vmem:[%s296 + $0x380] sm:$0xff]
      %v1898 = vld [vmem:[%s296 + $0x388] sm:$0xff]
      %v1899 = vld [vmem:[%s296 + $0x390] sm:$0xff]
      %v1900 = vld [vmem:[%s296 + $0x398] sm:$0xff]
      %v1901 = vld [vmem:[%s296 + $0x3a0] sm:$0xff]
      %v1902 = vld [vmem:[%s296 + $0x3a8] sm:$0xff]
      %v1903 = vld [vmem:[%s296 + $0x3b0] sm:$0xff]
      %v1904 = vld [vmem:[%s296 + $0x3b8] sm:$0xff]
      %v1905 = vld [vmem:[%s296 + $0x3c0] sm:$0xff]
      %v1906 = vld [vmem:[%s296 + $0x3c8] sm:$0xff]
      %v1907 = vld [vmem:[%s296 + $0x3d0] sm:$0xff]
      %v1908 = vld [vmem:[%s296 + $0x3d8] sm:$0xff]
      %v1909 = vld [vmem:[%s296 + $0x3e0] sm:$0xff]
      %v1910 = vld [vmem:[%s296 + $0x3e8] sm:$0xff]
      %v1911 = vld [vmem:[%s296 + $0x3f0] sm:$0xff]
      %v1912 = vld [vmem:[%s296 + $0x3f8] sm:$0xff]
      %v1913 = vld [vmem:[%s296 + $0x400] sm:$0xff]
      %v1914 = vld [vmem:[%s296 + $0x408] sm:$0xff]
      %v1915 = vld [vmem:[%s296 + $0x410] sm:$0xff]
      %v1916 = vld [vmem:[%s296 + $0x418] sm:$0xff]
      %v1917 = vld [vmem:[%s296 + $0x420] sm:$0xff]
      %v1918 = vld [vmem:[%s296 + $0x428] sm:$0xff]
      %v1919 = vld [vmem:[%s296 + $0x430] sm:$0xff]
      %v1920 = vld [vmem:[%s296 + $0x438] sm:$0xff]
      %v1921 = vld [vmem:[%s296 + $0x440] sm:$0xff]
      %v1922 = vld [vmem:[%s296 + $0x448] sm:$0xff]
      %v1923 = vld [vmem:[%s296 + $0x450] sm:$0xff]
      %v1924 = vld [vmem:[%s296 + $0x458] sm:$0xff]
      %v1925 = vld [vmem:[%s296 + $0x460] sm:$0xff]
      %v1926 = vld [vmem:[%s296 + $0x468] sm:$0xff]
      %v1927 = vld [vmem:[%s296 + $0x470] sm:$0xff]
      %v1928 = vld [vmem:[%s296 + $0x478] sm:$0xff]
      %v1929 = vld [vmem:[%s296 + $0x480] sm:$0xff]
      %v1930 = vld [vmem:[%s296 + $0x488] sm:$0xff]
      %v1931 = vld [vmem:[%s296 + $0x490] sm:$0xff]
      %v1932 = vld [vmem:[%s296 + $0x498] sm:$0xff]
      %v1933 = vld [vmem:[%s296 + $0x4a0] sm:$0xff]
      %v1934 = vld [vmem:[%s296 + $0x4a8] sm:$0xff]
      %v1935 = vld [vmem:[%s296 + $0x4b0] sm:$0xff]
      %v1936 = vld [vmem:[%s296 + $0x4b8] sm:$0xff]
      %v1937 = vld [vmem:[%s296 + $0x4c0] sm:$0xff]
      %v1938 = vld [vmem:[%s296 + $0x4c8] sm:$0xff]
      %v1939 = vld [vmem:[%s296 + $0x4d0] sm:$0xff]
      %v1940 = vld [vmem:[%s296 + $0x4d8] sm:$0xff]
      %v1941 = vld [vmem:[%s296 + $0x4e0] sm:$0xff]
      %v1942 = vld [vmem:[%s296 + $0x4e8] sm:$0xff]
      %v1943 = vld [vmem:[%s296 + $0x4f0] sm:$0xff]
      %v1944 = vld [vmem:[%s296 + $0x4f8] sm:$0xff]
      %v1945 = vld [vmem:[%s296 + $0x500] sm:$0xff]
      %v1946 = vld [vmem:[%s296 + $0x508] sm:$0xff]
      %v1947 = vld [vmem:[%s296 + $0x510] sm:$0xff]
      %v1948 = vld [vmem:[%s296 + $0x518] sm:$0xff]
      %v1949 = vld [vmem:[%s296 + $0x520] sm:$0xff]
      %v1950 = vld [vmem:[%s296 + $0x528] sm:$0xff]
      %v1951 = vld [vmem:[%s296 + $0x530] sm:$0xff]
      %v1952 = vld [vmem:[%s296 + $0x538] sm:$0xff]
      %v1953 = vld [vmem:[%s296 + $0x540] sm:$0xff]
      %v1954 = vld [vmem:[%s296 + $0x548] sm:$0xff]
      %v1955 = vld [vmem:[%s296 + $0x550] sm:$0xff]
      %v1956 = vld [vmem:[%s296 + $0x558] sm:$0xff]
      %v1957 = vld [vmem:[%s296 + $0x560] sm:$0xff]
      %v1958 = vld [vmem:[%s296 + $0x568] sm:$0xff]
      %v1959 = vld [vmem:[%s296 + $0x570] sm:$0xff]
      %v1960 = vld [vmem:[%s296 + $0x578] sm:$0xff]
      %v1961 = vld [vmem:[%s296 + $0x580] sm:$0xff]
      %v1962 = vld [vmem:[%s296 + $0x588] sm:$0xff]
      %v1963 = vld [vmem:[%s296 + $0x590] sm:$0xff]
      %v1964 = vld [vmem:[%s296 + $0x598] sm:$0xff]
      %v1965 = vld [vmem:[%s296 + $0x5a0] sm:$0xff]
      %v1966 = vld [vmem:[%s296 + $0x5a8] sm:$0xff]
      %v1967 = vld [vmem:[%s296 + $0x5b0] sm:$0xff]
      %v1968 = vld [vmem:[%s296 + $0x5b8] sm:$0xff]
      %v1969 = vld [vmem:[%s296 + $0x5c0] sm:$0xff]
      %v1970 = vld [vmem:[%s296 + $0x5c8] sm:$0xff]
      %v1971 = vld [vmem:[%s296 + $0x5d0] sm:$0xff]
      %v1972 = vld [vmem:[%s296 + $0x5d8] sm:$0xff]
      %v1973 = vld [vmem:[%s296 + $0x5e0] sm:$0xff]
      %v1974 = vld [vmem:[%s296 + $0x5e8] sm:$0xff]
      %v1975 = vld [vmem:[%s296 + $0x5f0] sm:$0xff]
      %v1976 = vld [vmem:[%s296 + $0x5f8] sm:$0xff]
      %v1977 = vld [vmem:[%s296 + $0x600] sm:$0xff]
      %v1978 = vld [vmem:[%s296 + $0x608] sm:$0xff]
      %v1979 = vld [vmem:[%s296 + $0x610] sm:$0xff]
      %v1980 = vld [vmem:[%s296 + $0x618] sm:$0xff]
      %v1981 = vld [vmem:[%s296 + $0x620] sm:$0xff]
      %v1982 = vld [vmem:[%s296 + $0x628] sm:$0xff]
      %v1983 = vld [vmem:[%s296 + $0x630] sm:$0xff]
      %v1984 = vld [vmem:[%s296 + $0x638] sm:$0xff]
      %v1985 = vld [vmem:[%s296 + $0x640] sm:$0xff]
      %v1986 = vld [vmem:[%s296 + $0x648] sm:$0xff]
      %v1987 = vld [vmem:[%s296 + $0x650] sm:$0xff]
      %v1988 = vld [vmem:[%s296 + $0x658] sm:$0xff]
      %v1989 = vld [vmem:[%s296 + $0x660] sm:$0xff]
      %v1990 = vld [vmem:[%s296 + $0x668] sm:$0xff]
      %v1991 = vld [vmem:[%s296 + $0x670] sm:$0xff]
      %v1992 = vld [vmem:[%s296 + $0x678] sm:$0xff]
      %v1993 = vld [vmem:[%s296 + $0x680] sm:$0xff]
      %v1994 = vld [vmem:[%s296 + $0x688] sm:$0xff]
      %v1995 = vld [vmem:[%s296 + $0x690] sm:$0xff]
      %v1996 = vld [vmem:[%s296 + $0x698] sm:$0xff]
      %v1997 = vld [vmem:[%s296 + $0x6a0] sm:$0xff]
      %v1998 = vld [vmem:[%s296 + $0x6a8] sm:$0xff]
      %v1999 = vld [vmem:[%s296 + $0x6b0] sm:$0xff]
      %v2000 = vld [vmem:[%s296 + $0x6b8] sm:$0xff]
      %v2001 = vld [vmem:[%s296 + $0x6c0] sm:$0xff]
      %v2002 = vld [vmem:[%s296 + $0x6c8] sm:$0xff]
      %v2003 = vld [vmem:[%s296 + $0x6d0] sm:$0xff]
      %v2004 = vld [vmem:[%s296 + $0x6d8] sm:$0xff]
      %v2005 = vld [vmem:[%s296 + $0x6e0] sm:$0xff]
      %v2006 = vld [vmem:[%s296 + $0x6e8] sm:$0xff]
      %v2007 = vld [vmem:[%s296 + $0x6f0] sm:$0xff]
      %v2008 = vld [vmem:[%s296 + $0x6f8] sm:$0xff]
      %v2009 = vadd.f32 %v856, %v1785
      %v2010 = vadd.f32 %v858, %v1786
      %v2011 = vadd.f32 %v1113, %v1787
      %v2012 = vadd.f32 %v1115, %v1788
      %v2013 = vadd.f32 %v1370, %v1789
      %v2014 = vadd.f32 %v1372, %v1790
      %v2015 = vadd.f32 %v1627, %v1791
      %v2016 = vadd.f32 %v862, %v1792
      %v2017 = vadd.f32 %v864, %v1793
      %v2018 = vadd.f32 %v1119, %v1794
      %v2019 = vadd.f32 %v1121, %v1795
      %v2020 = vadd.f32 %v1376, %v1796
      %v2021 = vadd.f32 %v1378, %v1797
      %v2022 = vadd.f32 %v1632, %v1798
      %v2023 = vadd.f32 %v868, %v1799
      %v2024 = vadd.f32 %v870, %v1800
      %v2025 = vadd.f32 %v1125, %v1801
      %v2026 = vadd.f32 %v1127, %v1802
      %v2027 = vadd.f32 %v1382, %v1803
      %v2028 = vadd.f32 %v1384, %v1804
      %v2029 = vadd.f32 %v1637, %v1805
      %v2030 = vadd.f32 %v874, %v1806
      %v2031 = vadd.f32 %v876, %v1807
      %v2032 = vadd.f32 %v1131, %v1808
      %v2033 = vadd.f32 %v1133, %v1809
      %v2034 = vadd.f32 %v1388, %v1810
      %v2035 = vadd.f32 %v1390, %v1811
      %v2036 = vadd.f32 %v1642, %v1812
      %v2037 = vadd.f32 %v880, %v1813
      %v2038 = vadd.f32 %v882, %v1814
      %v2039 = vadd.f32 %v1137, %v1815
      %v2040 = vadd.f32 %v1139, %v1816
      %v2041 = vadd.f32 %v1394, %v1817
      %v2042 = vadd.f32 %v1396, %v1818
      %v2043 = vadd.f32 %v1647, %v1819
      %v2044 = vadd.f32 %v886, %v1820
      %v2045 = vadd.f32 %v888, %v1821
      %v2046 = vadd.f32 %v1143, %v1822
      %v2047 = vadd.f32 %v1145, %v1823
      %v2048 = vadd.f32 %v1400, %v1824
      %v2049 = vadd.f32 %v1402, %v1825
      %v2050 = vadd.f32 %v1652, %v1826
      %v2051 = vadd.f32 %v892, %v1827
      %v2052 = vadd.f32 %v894, %v1828
      %v2053 = vadd.f32 %v1149, %v1829
      %v2054 = vadd.f32 %v1151, %v1830
      %v2055 = vadd.f32 %v1406, %v1831
      %v2056 = vadd.f32 %v1408, %v1832
      %v2057 = vadd.f32 %v1657, %v1833
      %v2058 = vadd.f32 %v898, %v1834
      %v2059 = vadd.f32 %v900, %v1835
      %v2060 = vadd.f32 %v1155, %v1836
      %v2061 = vadd.f32 %v1157, %v1837
      %v2062 = vadd.f32 %v1412, %v1838
      %v2063 = vadd.f32 %v1414, %v1839
      %v2064 = vadd.f32 %v1662, %v1840
      %v2065 = vadd.f32 %v904, %v1841
      %v2066 = vadd.f32 %v906, %v1842
      %v2067 = vadd.f32 %v1161, %v1843
      %v2068 = vadd.f32 %v1163, %v1844
      %v2069 = vadd.f32 %v1418, %v1845
      %v2070 = vadd.f32 %v1420, %v1846
      %v2071 = vadd.f32 %v1667, %v1847
      %v2072 = vadd.f32 %v910, %v1848
      %v2073 = vadd.f32 %v912, %v1849
      %v2074 = vadd.f32 %v1167, %v1850
      %v2075 = vadd.f32 %v1169, %v1851
      %v2076 = vadd.f32 %v1424, %v1852
      %v2077 = vadd.f32 %v1426, %v1853
      %v2078 = vadd.f32 %v1672, %v1854
      %v2079 = vadd.f32 %v916, %v1855
      %v2080 = vadd.f32 %v918, %v1856
      %v2081 = vadd.f32 %v1173, %v1857
      %v2082 = vadd.f32 %v1175, %v1858
      %v2083 = vadd.f32 %v1430, %v1859
      %v2084 = vadd.f32 %v1432, %v1860
      %v2085 = vadd.f32 %v1677, %v1861
      %v2086 = vadd.f32 %v922, %v1862
      %v2087 = vadd.f32 %v924, %v1863
      %v2088 = vadd.f32 %v1179, %v1864
      %v2089 = vadd.f32 %v1181, %v1865
      %v2090 = vadd.f32 %v1436, %v1866
      %v2091 = vadd.f32 %v1438, %v1867
      %v2092 = vadd.f32 %v1682, %v1868
      %v2093 = vadd.f32 %v928, %v1869
      %v2094 = vadd.f32 %v930, %v1870
      %v2095 = vadd.f32 %v1185, %v1871
      %v2096 = vadd.f32 %v1187, %v1872
      %v2097 = vadd.f32 %v1442, %v1873
      %v2098 = vadd.f32 %v1444, %v1874
      %v2099 = vadd.f32 %v1687, %v1875
      %v2100 = vadd.f32 %v934, %v1876
      %v2101 = vadd.f32 %v936, %v1877
      %v2102 = vadd.f32 %v1191, %v1878
      %v2103 = vadd.f32 %v1193, %v1879
      %v2104 = vadd.f32 %v1448, %v1880
      %v2105 = vadd.f32 %v1450, %v1881
      %v2106 = vadd.f32 %v1692, %v1882
      %v2107 = vadd.f32 %v940, %v1883
      %v2108 = vadd.f32 %v942, %v1884
      %v2109 = vadd.f32 %v1197, %v1885
      %v2110 = vadd.f32 %v1199, %v1886
      %v2111 = vadd.f32 %v1454, %v1887
      %v2112 = vadd.f32 %v1456, %v1888
      %v2113 = vadd.f32 %v1697, %v1889
      %v2114 = vadd.f32 %v946, %v1890
      %v2115 = vadd.f32 %v948, %v1891
      %v2116 = vadd.f32 %v1203, %v1892
      %v2117 = vadd.f32 %v1205, %v1893
      %v2118 = vadd.f32 %v1460, %v1894
      %v2119 = vadd.f32 %v1462, %v1895
      %v2120 = vadd.f32 %v1702, %v1896
      %v2121 = vadd.f32 %v952, %v1897
      %v2122 = vadd.f32 %v954, %v1898
      %v2123 = vadd.f32 %v1209, %v1899
      %v2124 = vadd.f32 %v1211, %v1900
      %v2125 = vadd.f32 %v1466, %v1901
      %v2126 = vadd.f32 %v1468, %v1902
      %v2127 = vadd.f32 %v1707, %v1903
      %v2128 = vadd.f32 %v958, %v1904
      %v2129 = vadd.f32 %v960, %v1905
      %v2130 = vadd.f32 %v1215, %v1906
      %v2131 = vadd.f32 %v1217, %v1907
      %v2132 = vadd.f32 %v1472, %v1908
      %v2133 = vadd.f32 %v1474, %v1909
      %v2134 = vadd.f32 %v1712, %v1910
      %v2135 = vadd.f32 %v964, %v1911
      %v2136 = vadd.f32 %v966, %v1912
      %v2137 = vadd.f32 %v1221, %v1913
      %v2138 = vadd.f32 %v1223, %v1914
      %v2139 = vadd.f32 %v1478, %v1915
      %v2140 = vadd.f32 %v1480, %v1916
      %v2141 = vadd.f32 %v1717, %v1917
      %v2142 = vadd.f32 %v970, %v1918
      %v2143 = vadd.f32 %v972, %v1919
      %v2144 = vadd.f32 %v1227, %v1920
      %v2145 = vadd.f32 %v1229, %v1921
      %v2146 = vadd.f32 %v1484, %v1922
      %v2147 = vadd.f32 %v1486, %v1923
      %v2148 = vadd.f32 %v1722, %v1924
      %v2149 = vadd.f32 %v976, %v1925
      %v2150 = vadd.f32 %v978, %v1926
      %v2151 = vadd.f32 %v1233, %v1927
      %v2152 = vadd.f32 %v1235, %v1928
      %v2153 = vadd.f32 %v1490, %v1929
      %v2154 = vadd.f32 %v1492, %v1930
      %v2155 = vadd.f32 %v1727, %v1931
      %v2156 = vadd.f32 %v982, %v1932
      %v2157 = vadd.f32 %v984, %v1933
      %v2158 = vadd.f32 %v1239, %v1934
      %v2159 = vadd.f32 %v1241, %v1935
      %v2160 = vadd.f32 %v1496, %v1936
      %v2161 = vadd.f32 %v1498, %v1937
      %v2162 = vadd.f32 %v1732, %v1938
      %v2163 = vadd.f32 %v988, %v1939
      %v2164 = vadd.f32 %v990, %v1940
      %v2165 = vadd.f32 %v1245, %v1941
      %v2166 = vadd.f32 %v1247, %v1942
      %v2167 = vadd.f32 %v1502, %v1943
      %v2168 = vadd.f32 %v1504, %v1944
      %v2169 = vadd.f32 %v1737, %v1945
      %v2170 = vadd.f32 %v994, %v1946
      %v2171 = vadd.f32 %v996, %v1947
      %v2172 = vadd.f32 %v1251, %v1948
      %v2173 = vadd.f32 %v1253, %v1949
      %v2174 = vadd.f32 %v1508, %v1950
      %v2175 = vadd.f32 %v1510, %v1951
      %v2176 = vadd.f32 %v1742, %v1952
      %v2177 = vadd.f32 %v1000, %v1953
      %v2178 = vadd.f32 %v1002, %v1954
      %v2179 = vadd.f32 %v1257, %v1955
      %v2180 = vadd.f32 %v1259, %v1956
      %v2181 = vadd.f32 %v1514, %v1957
      %v2182 = vadd.f32 %v1516, %v1958
      %v2183 = vadd.f32 %v1747, %v1959
      %v2184 = vadd.f32 %v1006, %v1960
      %v2185 = vadd.f32 %v1008, %v1961
      %v2186 = vadd.f32 %v1263, %v1962
      %v2187 = vadd.f32 %v1265, %v1963
      %v2188 = vadd.f32 %v1520, %v1964
      %v2189 = vadd.f32 %v1522, %v1965
      %v2190 = vadd.f32 %v1752, %v1966
      %v2191 = vadd.f32 %v1012, %v1967
      %v2192 = vadd.f32 %v1014, %v1968
      %v2193 = vadd.f32 %v1269, %v1969
      %v2194 = vadd.f32 %v1271, %v1970
      %v2195 = vadd.f32 %v1526, %v1971
      %v2196 = vadd.f32 %v1528, %v1972
      %v2197 = vadd.f32 %v1757, %v1973
      %v2198 = vadd.f32 %v1018, %v1974
      %v2199 = vadd.f32 %v1020, %v1975
      %v2200 = vadd.f32 %v1275, %v1976
      %v2201 = vadd.f32 %v1277, %v1977
      %v2202 = vadd.f32 %v1532, %v1978
      %v2203 = vadd.f32 %v1534, %v1979
      %v2204 = vadd.f32 %v1762, %v1980
      %v2205 = vadd.f32 %v1024, %v1981
      %v2206 = vadd.f32 %v1026, %v1982
      %v2207 = vadd.f32 %v1281, %v1983
      %v2208 = vadd.f32 %v1283, %v1984
      %v2209 = vadd.f32 %v1538, %v1985
      %v2210 = vadd.f32 %v1540, %v1986
      %v2211 = vadd.f32 %v1767, %v1987
      %v2212 = vadd.f32 %v1030, %v1988
      %v2213 = vadd.f32 %v1032, %v1989
      %v2214 = vadd.f32 %v1287, %v1990
      %v2215 = vadd.f32 %v1289, %v1991
      %v2216 = vadd.f32 %v1544, %v1992
      %v2217 = vadd.f32 %v1546, %v1993
      %v2218 = vadd.f32 %v1772, %v1994
      %v2219 = vadd.f32 %v1036, %v1995
      %v2220 = vadd.f32 %v1038, %v1996
      %v2221 = vadd.f32 %v1293, %v1997
      %v2222 = vadd.f32 %v1295, %v1998
      %v2223 = vadd.f32 %v1550, %v1999
      %v2224 = vadd.f32 %v1552, %v2000
      %v2225 = vadd.f32 %v1777, %v2001
      %v2226 = vadd.f32 %v1042, %v2002
      %v2227 = vadd.f32 %v1044, %v2003
      %v2228 = vadd.f32 %v1299, %v2004
      %v2229 = vadd.f32 %v1301, %v2005
      %v2230 = vadd.f32 %v1556, %v2006
      %v2231 = vadd.f32 %v1558, %v2007
      %v2232 = vadd.f32 %v1782, %v2008
      %v2233 = vmax.f32 %v2009, 0.0
      %v2234 = vmax.f32 %v2010, 0.0
      %v2235 = vmax.f32 %v2011, 0.0
      %v2236 = vmax.f32 %v2012, 0.0
      %v2237 = vmax.f32 %v2013, 0.0
      %v2238 = vmax.f32 %v2014, 0.0
      %v2239 = vmax.f32 %v2015, 0.0
      %v2240 = vmax.f32 %v2016, 0.0
      %v2241 = vmax.f32 %v2017, 0.0
      %v2242 = vmax.f32 %v2018, 0.0
      %v2243 = vmax.f32 %v2019, 0.0
      %v2244 = vmax.f32 %v2020, 0.0
      %v2245 = vmax.f32 %v2021, 0.0
      %v2246 = vmax.f32 %v2022, 0.0
      %v2247 = vmax.f32 %v2023, 0.0
      %v2248 = vmax.f32 %v2024, 0.0
      %v2249 = vmax.f32 %v2025, 0.0
      %v2250 = vmax.f32 %v2026, 0.0
      %v2251 = vmax.f32 %v2027, 0.0
      %v2252 = vmax.f32 %v2028, 0.0
      %v2253 = vmax.f32 %v2029, 0.0
      %v2254 = vmax.f32 %v2030, 0.0
      %v2255 = vmax.f32 %v2031, 0.0
      %v2256 = vmax.f32 %v2032, 0.0
      %v2257 = vmax.f32 %v2033, 0.0
      %v2258 = vmax.f32 %v2034, 0.0
      %v2259 = vmax.f32 %v2035, 0.0
      %v2260 = vmax.f32 %v2036, 0.0
      %v2261 = vmax.f32 %v2037, 0.0
      %v2262 = vmax.f32 %v2038, 0.0
      %v2263 = vmax.f32 %v2039, 0.0
      %v2264 = vmax.f32 %v2040, 0.0
      %v2265 = vmax.f32 %v2041, 0.0
      %v2266 = vmax.f32 %v2042, 0.0
      %v2267 = vmax.f32 %v2043, 0.0
      %v2268 = vmax.f32 %v2044, 0.0
      %v2269 = vmax.f32 %v2045, 0.0
      %v2270 = vmax.f32 %v2046, 0.0
      %v2271 = vmax.f32 %v2047, 0.0
      %v2272 = vmax.f32 %v2048, 0.0
      %v2273 = vmax.f32 %v2049, 0.0
      %v2274 = vmax.f32 %v2050, 0.0
      %v2275 = vmax.f32 %v2051, 0.0
      %v2276 = vmax.f32 %v2052, 0.0
      %v2277 = vmax.f32 %v2053, 0.0
      %v2278 = vmax.f32 %v2054, 0.0
      %v2279 = vmax.f32 %v2055, 0.0
      %v2280 = vmax.f32 %v2056, 0.0
      %v2281 = vmax.f32 %v2057, 0.0
      %v2282 = vmax.f32 %v2058, 0.0
      %v2283 = vmax.f32 %v2059, 0.0
      %v2284 = vmax.f32 %v2060, 0.0
      %v2285 = vmax.f32 %v2061, 0.0
      %v2286 = vmax.f32 %v2062, 0.0
      %v2287 = vmax.f32 %v2063, 0.0
      %v2288 = vmax.f32 %v2064, 0.0
      %v2289 = vmax.f32 %v2065, 0.0
      %v2290 = vmax.f32 %v2066, 0.0
      %v2291 = vmax.f32 %v2067, 0.0
      %v2292 = vmax.f32 %v2068, 0.0
      %v2293 = vmax.f32 %v2069, 0.0
      %v2294 = vmax.f32 %v2070, 0.0
      %v2295 = vmax.f32 %v2071, 0.0
      %v2296 = vmax.f32 %v2072, 0.0
      %v2297 = vmax.f32 %v2073, 0.0
      %v2298 = vmax.f32 %v2074, 0.0
      %v2299 = vmax.f32 %v2075, 0.0
      %v2300 = vmax.f32 %v2076, 0.0
      %v2301 = vmax.f32 %v2077, 0.0
      %v2302 = vmax.f32 %v2078, 0.0
      %v2303 = vmax.f32 %v2079, 0.0
      %v2304 = vmax.f32 %v2080, 0.0
      %v2305 = vmax.f32 %v2081, 0.0
      %v2306 = vmax.f32 %v2082, 0.0
      %v2307 = vmax.f32 %v2083, 0.0
      %v2308 = vmax.f32 %v2084, 0.0
      %v2309 = vmax.f32 %v2085, 0.0
      %v2310 = vmax.f32 %v2086, 0.0
      %v2311 = vmax.f32 %v2087, 0.0
      %v2312 = vmax.f32 %v2088, 0.0
      %v2313 = vmax.f32 %v2089, 0.0
      %v2314 = vmax.f32 %v2090, 0.0
      %v2315 = vmax.f32 %v2091, 0.0
      %v2316 = vmax.f32 %v2092, 0.0
      %v2317 = vmax.f32 %v2093, 0.0
      %v2318 = vmax.f32 %v2094, 0.0
      %v2319 = vmax.f32 %v2095, 0.0
      %v2320 = vmax.f32 %v2096, 0.0
      %v2321 = vmax.f32 %v2097, 0.0
      %v2322 = vmax.f32 %v2098, 0.0
      %v2323 = vmax.f32 %v2099, 0.0
      %v2324 = vmax.f32 %v2100, 0.0
      %v2325 = vmax.f32 %v2101, 0.0
      %v2326 = vmax.f32 %v2102, 0.0
      %v2327 = vmax.f32 %v2103, 0.0
      %v2328 = vmax.f32 %v2104, 0.0
      %v2329 = vmax.f32 %v2105, 0.0
      %v2330 = vmax.f32 %v2106, 0.0
      %v2331 = vmax.f32 %v2107, 0.0
      %v2332 = vmax.f32 %v2108, 0.0
      %v2333 = vmax.f32 %v2109, 0.0
      %v2334 = vmax.f32 %v2110, 0.0
      %v2335 = vmax.f32 %v2111, 0.0
      %v2336 = vmax.f32 %v2112, 0.0
      %v2337 = vmax.f32 %v2113, 0.0
      %v2338 = vmax.f32 %v2114, 0.0
      %v2339 = vmax.f32 %v2115, 0.0
      %v2340 = vmax.f32 %v2116, 0.0
      %v2341 = vmax.f32 %v2117, 0.0
      %v2342 = vmax.f32 %v2118, 0.0
      %v2343 = vmax.f32 %v2119, 0.0
      %v2344 = vmax.f32 %v2120, 0.0
      %v2345 = vmax.f32 %v2121, 0.0
      %v2346 = vmax.f32 %v2122, 0.0
      %v2347 = vmax.f32 %v2123, 0.0
      %v2348 = vmax.f32 %v2124, 0.0
      %v2349 = vmax.f32 %v2125, 0.0
      %v2350 = vmax.f32 %v2126, 0.0
      %v2351 = vmax.f32 %v2127, 0.0
      %v2352 = vmax.f32 %v2128, 0.0
      %v2353 = vmax.f32 %v2129, 0.0
      %v2354 = vmax.f32 %v2130, 0.0
      %v2355 = vmax.f32 %v2131, 0.0
      %v2356 = vmax.f32 %v2132, 0.0
      %v2357 = vmax.f32 %v2133, 0.0
      %v2358 = vmax.f32 %v2134, 0.0
      %v2359 = vmax.f32 %v2135, 0.0
      %v2360 = vmax.f32 %v2136, 0.0
      %v2361 = vmax.f32 %v2137, 0.0
      %v2362 = vmax.f32 %v2138, 0.0
      %v2363 = vmax.f32 %v2139, 0.0
      %v2364 = vmax.f32 %v2140, 0.0
      %v2365 = vmax.f32 %v2141, 0.0
      %v2366 = vmax.f32 %v2142, 0.0
      %v2367 = vmax.f32 %v2143, 0.0
      %v2368 = vmax.f32 %v2144, 0.0
      %v2369 = vmax.f32 %v2145, 0.0
      %v2370 = vmax.f32 %v2146, 0.0
      %v2371 = vmax.f32 %v2147, 0.0
      %v2372 = vmax.f32 %v2148, 0.0
      %v2373 = vmax.f32 %v2149, 0.0
      %v2374 = vmax.f32 %v2150, 0.0
      %v2375 = vmax.f32 %v2151, 0.0
      %v2376 = vmax.f32 %v2152, 0.0
      %v2377 = vmax.f32 %v2153, 0.0
      %v2378 = vmax.f32 %v2154, 0.0
      %v2379 = vmax.f32 %v2155, 0.0
      %v2380 = vmax.f32 %v2156, 0.0
      %v2381 = vmax.f32 %v2157, 0.0
      %v2382 = vmax.f32 %v2158, 0.0
      %v2383 = vmax.f32 %v2159, 0.0
      %v2384 = vmax.f32 %v2160, 0.0
      %v2385 = vmax.f32 %v2161, 0.0
      %v2386 = vmax.f32 %v2162, 0.0
      %v2387 = vmax.f32 %v2163, 0.0
      %v2388 = vmax.f32 %v2164, 0.0
      %v2389 = vmax.f32 %v2165, 0.0
      %v2390 = vmax.f32 %v2166, 0.0
      %v2391 = vmax.f32 %v2167, 0.0
      %v2392 = vmax.f32 %v2168, 0.0
      %v2393 = vmax.f32 %v2169, 0.0
      %v2394 = vmax.f32 %v2170, 0.0
      %v2395 = vmax.f32 %v2171, 0.0
      %v2396 = vmax.f32 %v2172, 0.0
      %v2397 = vmax.f32 %v2173, 0.0
      %v2398 = vmax.f32 %v2174, 0.0
      %v2399 = vmax.f32 %v2175, 0.0
      %v2400 = vmax.f32 %v2176, 0.0
      %v2401 = vmax.f32 %v2177, 0.0
      %v2402 = vmax.f32 %v2178, 0.0
      %v2403 = vmax.f32 %v2179, 0.0
      %v2404 = vmax.f32 %v2180, 0.0
      %v2405 = vmax.f32 %v2181, 0.0
      %v2406 = vmax.f32 %v2182, 0.0
      %v2407 = vmax.f32 %v2183, 0.0
      %v2408 = vmax.f32 %v2184, 0.0
      %v2409 = vmax.f32 %v2185, 0.0
      %v2410 = vmax.f32 %v2186, 0.0
      %v2411 = vmax.f32 %v2187, 0.0
      %v2412 = vmax.f32 %v2188, 0.0
      %v2413 = vmax.f32 %v2189, 0.0
      %v2414 = vmax.f32 %v2190, 0.0
      %v2415 = vmax.f32 %v2191, 0.0
      %v2416 = vmax.f32 %v2192, 0.0
      %v2417 = vmax.f32 %v2193, 0.0
      %v2418 = vmax.f32 %v2194, 0.0
      %v2419 = vmax.f32 %v2195, 0.0
      %v2420 = vmax.f32 %v2196, 0.0
      %v2421 = vmax.f32 %v2197, 0.0
      %v2422 = vmax.f32 %v2198, 0.0
      %v2423 = vmax.f32 %v2199, 0.0
      %v2424 = vmax.f32 %v2200, 0.0
      %v2425 = vmax.f32 %v2201, 0.0
      %v2426 = vmax.f32 %v2202, 0.0
      %v2427 = vmax.f32 %v2203, 0.0
      %v2428 = vmax.f32 %v2204, 0.0
      %v2429 = vmax.f32 %v2205, 0.0
      %v2430 = vmax.f32 %v2206, 0.0
      %v2431 = vmax.f32 %v2207, 0.0
      %v2432 = vmax.f32 %v2208, 0.0
      %v2433 = vmax.f32 %v2209, 0.0
      %v2434 = vmax.f32 %v2210, 0.0
      %v2435 = vmax.f32 %v2211, 0.0
      %v2436 = vmax.f32 %v2212, 0.0
      %v2437 = vmax.f32 %v2213, 0.0
      %v2438 = vmax.f32 %v2214, 0.0
      %v2439 = vmax.f32 %v2215, 0.0
      %v2440 = vmax.f32 %v2216, 0.0
      %v2441 = vmax.f32 %v2217, 0.0
      %v2442 = vmax.f32 %v2218, 0.0
      %v2443 = vmax.f32 %v2219, 0.0
      %v2444 = vmax.f32 %v2220, 0.0
      %v2445 = vmax.f32 %v2221, 0.0
      %v2446 = vmax.f32 %v2222, 0.0
      %v2447 = vmax.f32 %v2223, 0.0
      %v2448 = vmax.f32 %v2224, 0.0
      %v2449 = vmax.f32 %v2225, 0.0
      %v2450 = vmax.f32 %v2226, 0.0
      %v2451 = vmax.f32 %v2227, 0.0
      %v2452 = vmax.f32 %v2228, 0.0
      %v2453 = vmax.f32 %v2229, 0.0
      %v2454 = vmax.f32 %v2230, 0.0
      %v2455 = vmax.f32 %v2231, 0.0
      %v2456 = vmax.f32 %v2232, 0.0
      %2457 = vst [vmem:[%s307] sm:$0xff] %v2233
      %2458 = vst [vmem:[%s307 + $0x8] sm:$0xff] %v2234
      %2459 = vst [vmem:[%s307 + $0x10] sm:$0xff] %v2235
      %2460 = vst [vmem:[%s307 + $0x18] sm:$0xff] %v2236
      %2461 = vst [vmem:[%s307 + $0x20] sm:$0xff] %v2237
      %2462 = vst [vmem:[%s307 + $0x28] sm:$0xff] %v2238
      %vm2463 = vcmask 130048
      %2464 = vst.msk [vmem:[%s307 + $0x30] sm:$0xff] %vm2463, %v2239
      %2465 = vst [vmem:[%s307 + $0x38] sm:$0xff] %v2240
      %2466 = vst [vmem:[%s307 + $0x40] sm:$0xff] %v2241
      %2467 = vst [vmem:[%s307 + $0x48] sm:$0xff] %v2242
      %2468 = vst [vmem:[%s307 + $0x50] sm:$0xff] %v2243
      %2469 = vst [vmem:[%s307 + $0x58] sm:$0xff] %v2244
      %2470 = vst [vmem:[%s307 + $0x60] sm:$0xff] %v2245
      %2471 = vst.msk [vmem:[%s307 + $0x68] sm:$0xff] %vm2463, %v2246
      %2472 = vst [vmem:[%s307 + $0x70] sm:$0xff] %v2247
      %2473 = vst [vmem:[%s307 + $0x78] sm:$0xff] %v2248
      %2474 = vst [vmem:[%s307 + $0x80] sm:$0xff] %v2249
      %2475 = vst [vmem:[%s307 + $0x88] sm:$0xff] %v2250
      %2476 = vst [vmem:[%s307 + $0x90] sm:$0xff] %v2251
      %2477 = vst [vmem:[%s307 + $0x98] sm:$0xff] %v2252
      %2478 = vst.msk [vmem:[%s307 + $0xa0] sm:$0xff] %vm2463, %v2253
      %2479 = vst [vmem:[%s307 + $0xa8] sm:$0xff] %v2254
      %2480 = vst [vmem:[%s307 + $0xb0] sm:$0xff] %v2255
      %2481 = vst [vmem:[%s307 + $0xb8] sm:$0xff] %v2256
      %2482 = vst [vmem:[%s307 + $0xc0] sm:$0xff] %v2257
      %2483 = vst [vmem:[%s307 + $0xc8] sm:$0xff] %v2258
      %2484 = vst [vmem:[%s307 + $0xd0] sm:$0xff] %v2259
      %2485 = vst.msk [vmem:[%s307 + $0xd8] sm:$0xff] %vm2463, %v2260
      %2486 = vst [vmem:[%s307 + $0xe0] sm:$0xff] %v2261
      %2487 = vst [vmem:[%s307 + $0xe8] sm:$0xff] %v2262
      %2488 = vst [vmem:[%s307 + $0xf0] sm:$0xff] %v2263
      %2489 = vst [vmem:[%s307 + $0xf8] sm:$0xff] %v2264
      %2490 = vst [vmem:[%s307 + $0x100] sm:$0xff] %v2265
      %2491 = vst [vmem:[%s307 + $0x108] sm:$0xff] %v2266
      %2492 = vst.msk [vmem:[%s307 + $0x110] sm:$0xff] %vm2463, %v2267
      %2493 = vst [vmem:[%s307 + $0x118] sm:$0xff] %v2268
      %2494 = vst [vmem:[%s307 + $0x120] sm:$0xff] %v2269
      %2495 = vst [vmem:[%s307 + $0x128] sm:$0xff] %v2270
      %2496 = vst [vmem:[%s307 + $0x130] sm:$0xff] %v2271
      %2497 = vst [vmem:[%s307 + $0x138] sm:$0xff] %v2272
      %2498 = vst [vmem:[%s307 + $0x140] sm:$0xff] %v2273
      %2499 = vst.msk [vmem:[%s307 + $0x148] sm:$0xff] %vm2463, %v2274
      %2500 = vst [vmem:[%s307 + $0x150] sm:$0xff] %v2275
      %2501 = vst [vmem:[%s307 + $0x158] sm:$0xff] %v2276
      %2502 = vst [vmem:[%s307 + $0x160] sm:$0xff] %v2277
      %2503 = vst [vmem:[%s307 + $0x168] sm:$0xff] %v2278
      %2504 = vst [vmem:[%s307 + $0x170] sm:$0xff] %v2279
      %2505 = vst [vmem:[%s307 + $0x178] sm:$0xff] %v2280
      %2506 = vst.msk [vmem:[%s307 + $0x180] sm:$0xff] %vm2463, %v2281
      %2507 = vst [vmem:[%s307 + $0x188] sm:$0xff] %v2282
      %2508 = vst [vmem:[%s307 + $0x190] sm:$0xff] %v2283
      %2509 = vst [vmem:[%s307 + $0x198] sm:$0xff] %v2284
      %2510 = vst [vmem:[%s307 + $0x1a0] sm:$0xff] %v2285
      %2511 = vst [vmem:[%s307 + $0x1a8] sm:$0xff] %v2286
      %2512 = vst [vmem:[%s307 + $0x1b0] sm:$0xff] %v2287
      %2513 = vst.msk [vmem:[%s307 + $0x1b8] sm:$0xff] %vm2463, %v2288
      %2514 = vst [vmem:[%s307 + $0x1c0] sm:$0xff] %v2289
      %2515 = vst [vmem:[%s307 + $0x1c8] sm:$0xff] %v2290
      %2516 = vst [vmem:[%s307 + $0x1d0] sm:$0xff] %v2291
      %2517 = vst [vmem:[%s307 + $0x1d8] sm:$0xff] %v2292
      %2518 = vst [vmem:[%s307 + $0x1e0] sm:$0xff] %v2293
      %2519 = vst [vmem:[%s307 + $0x1e8] sm:$0xff] %v2294
      %2520 = vst.msk [vmem:[%s307 + $0x1f0] sm:$0xff] %vm2463, %v2295
      %2521 = vst [vmem:[%s307 + $0x1f8] sm:$0xff] %v2296
      %2522 = vst [vmem:[%s307 + $0x200] sm:$0xff] %v2297
      %2523 = vst [vmem:[%s307 + $0x208] sm:$0xff] %v2298
      %2524 = vst [vmem:[%s307 + $0x210] sm:$0xff] %v2299
      %2525 = vst [vmem:[%s307 + $0x218] sm:$0xff] %v2300
      %2526 = vst [vmem:[%s307 + $0x220] sm:$0xff] %v2301
      %2527 = vst.msk [vmem:[%s307 + $0x228] sm:$0xff] %vm2463, %v2302
      %2528 = vst [vmem:[%s307 + $0x230] sm:$0xff] %v2303
      %2529 = vst [vmem:[%s307 + $0x238] sm:$0xff] %v2304
      %2530 = vst [vmem:[%s307 + $0x240] sm:$0xff] %v2305
      %2531 = vst [vmem:[%s307 + $0x248] sm:$0xff] %v2306
      %2532 = vst [vmem:[%s307 + $0x250] sm:$0xff] %v2307
      %2533 = vst [vmem:[%s307 + $0x258] sm:$0xff] %v2308
      %2534 = vst.msk [vmem:[%s307 + $0x260] sm:$0xff] %vm2463, %v2309
      %2535 = vst [vmem:[%s307 + $0x268] sm:$0xff] %v2310
      %2536 = vst [vmem:[%s307 + $0x270] sm:$0xff] %v2311
      %2537 = vst [vmem:[%s307 + $0x278] sm:$0xff] %v2312
      %2538 = vst [vmem:[%s307 + $0x280] sm:$0xff] %v2313
      %2539 = vst [vmem:[%s307 + $0x288] sm:$0xff] %v2314
      %2540 = vst [vmem:[%s307 + $0x290] sm:$0xff] %v2315
      %2541 = vst.msk [vmem:[%s307 + $0x298] sm:$0xff] %vm2463, %v2316
      %2542 = vst [vmem:[%s307 + $0x2a0] sm:$0xff] %v2317
      %2543 = vst [vmem:[%s307 + $0x2a8] sm:$0xff] %v2318
      %2544 = vst [vmem:[%s307 + $0x2b0] sm:$0xff] %v2319
      %2545 = vst [vmem:[%s307 + $0x2b8] sm:$0xff] %v2320
      %2546 = vst [vmem:[%s307 + $0x2c0] sm:$0xff] %v2321
      %2547 = vst [vmem:[%s307 + $0x2c8] sm:$0xff] %v2322
      %2548 = vst.msk [vmem:[%s307 + $0x2d0] sm:$0xff] %vm2463, %v2323
      %2549 = vst [vmem:[%s307 + $0x2d8] sm:$0xff] %v2324
      %2550 = vst [vmem:[%s307 + $0x2e0] sm:$0xff] %v2325
      %2551 = vst [vmem:[%s307 + $0x2e8] sm:$0xff] %v2326
      %2552 = vst [vmem:[%s307 + $0x2f0] sm:$0xff] %v2327
      %2553 = vst [vmem:[%s307 + $0x2f8] sm:$0xff] %v2328
      %2554 = vst [vmem:[%s307 + $0x300] sm:$0xff] %v2329
      %2555 = vst.msk [vmem:[%s307 + $0x308] sm:$0xff] %vm2463, %v2330
      %2556 = vst [vmem:[%s307 + $0x310] sm:$0xff] %v2331
      %2557 = vst [vmem:[%s307 + $0x318] sm:$0xff] %v2332
      %2558 = vst [vmem:[%s307 + $0x320] sm:$0xff] %v2333
      %2559 = vst [vmem:[%s307 + $0x328] sm:$0xff] %v2334
      %2560 = vst [vmem:[%s307 + $0x330] sm:$0xff] %v2335
      %2561 = vst [vmem:[%s307 + $0x338] sm:$0xff] %v2336
      %2562 = vst.msk [vmem:[%s307 + $0x340] sm:$0xff] %vm2463, %v2337
      %2563 = vst [vmem:[%s307 + $0x348] sm:$0xff] %v2338
      %2564 = vst [vmem:[%s307 + $0x350] sm:$0xff] %v2339
      %2565 = vst [vmem:[%s307 + $0x358] sm:$0xff] %v2340
      %2566 = vst [vmem:[%s307 + $0x360] sm:$0xff] %v2341
      %2567 = vst [vmem:[%s307 + $0x368] sm:$0xff] %v2342
      %2568 = vst [vmem:[%s307 + $0x370] sm:$0xff] %v2343
      %2569 = vst.msk [vmem:[%s307 + $0x378] sm:$0xff] %vm2463, %v2344
      %2570 = vst [vmem:[%s307 + $0x380] sm:$0xff] %v2345
      %2571 = vst [vmem:[%s307 + $0x388] sm:$0xff] %v2346
      %2572 = vst [vmem:[%s307 + $0x390] sm:$0xff] %v2347
      %2573 = vst [vmem:[%s307 + $0x398] sm:$0xff] %v2348
      %2574 = vst [vmem:[%s307 + $0x3a0] sm:$0xff] %v2349
      %2575 = vst [vmem:[%s307 + $0x3a8] sm:$0xff] %v2350
      %2576 = vst.msk [vmem:[%s307 + $0x3b0] sm:$0xff] %vm2463, %v2351
      %2577 = vst [vmem:[%s307 + $0x3b8] sm:$0xff] %v2352
      %2578 = vst [vmem:[%s307 + $0x3c0] sm:$0xff] %v2353
      %2579 = vst [vmem:[%s307 + $0x3c8] sm:$0xff] %v2354
      %2580 = vst [vmem:[%s307 + $0x3d0] sm:$0xff] %v2355
      %2581 = vst [vmem:[%s307 + $0x3d8] sm:$0xff] %v2356
      %2582 = vst [vmem:[%s307 + $0x3e0] sm:$0xff] %v2357
      %2583 = vst.msk [vmem:[%s307 + $0x3e8] sm:$0xff] %vm2463, %v2358
      %2584 = vst [vmem:[%s307 + $0x3f0] sm:$0xff] %v2359
      %2585 = vst [vmem:[%s307 + $0x3f8] sm:$0xff] %v2360
      %2586 = vst [vmem:[%s307 + $0x400] sm:$0xff] %v2361
      %2587 = vst [vmem:[%s307 + $0x408] sm:$0xff] %v2362
      %2588 = vst [vmem:[%s307 + $0x410] sm:$0xff] %v2363
      %2589 = vst [vmem:[%s307 + $0x418] sm:$0xff] %v2364
      %2590 = vst.msk [vmem:[%s307 + $0x420] sm:$0xff] %vm2463, %v2365
      %2591 = vst [vmem:[%s307 + $0x428] sm:$0xff] %v2366
      %2592 = vst [vmem:[%s307 + $0x430] sm:$0xff] %v2367
      %2593 = vst [vmem:[%s307 + $0x438] sm:$0xff] %v2368
      %2594 = vst [vmem:[%s307 + $0x440] sm:$0xff] %v2369
      %2595 = vst [vmem:[%s307 + $0x448] sm:$0xff] %v2370
      %2596 = vst [vmem:[%s307 + $0x450] sm:$0xff] %v2371
      %2597 = vst.msk [vmem:[%s307 + $0x458] sm:$0xff] %vm2463, %v2372
      %2598 = vst [vmem:[%s307 + $0x460] sm:$0xff] %v2373
      %2599 = vst [vmem:[%s307 + $0x468] sm:$0xff] %v2374
      %2600 = vst [vmem:[%s307 + $0x470] sm:$0xff] %v2375
      %2601 = vst [vmem:[%s307 + $0x478] sm:$0xff] %v2376
      %2602 = vst [vmem:[%s307 + $0x480] sm:$0xff] %v2377
      %2603 = vst [vmem:[%s307 + $0x488] sm:$0xff] %v2378
      %2604 = vst.msk [vmem:[%s307 + $0x490] sm:$0xff] %vm2463, %v2379
      %2605 = vst [vmem:[%s307 + $0x498] sm:$0xff] %v2380
      %2606 = vst [vmem:[%s307 + $0x4a0] sm:$0xff] %v2381
      %2607 = vst [vmem:[%s307 + $0x4a8] sm:$0xff] %v2382
      %2608 = vst [vmem:[%s307 + $0x4b0] sm:$0xff] %v2383
      %2609 = vst [vmem:[%s307 + $0x4b8] sm:$0xff] %v2384
      %2610 = vst [vmem:[%s307 + $0x4c0] sm:$0xff] %v2385
      %2611 = vst.msk [vmem:[%s307 + $0x4c8] sm:$0xff] %vm2463, %v2386
      %2612 = vst [vmem:[%s307 + $0x4d0] sm:$0xff] %v2387
      %2613 = vst [vmem:[%s307 + $0x4d8] sm:$0xff] %v2388
      %2614 = vst [vmem:[%s307 + $0x4e0] sm:$0xff] %v2389
      %2615 = vst [vmem:[%s307 + $0x4e8] sm:$0xff] %v2390
      %2616 = vst [vmem:[%s307 + $0x4f0] sm:$0xff] %v2391
      %2617 = vst [vmem:[%s307 + $0x4f8] sm:$0xff] %v2392
      %2618 = vst.msk [vmem:[%s307 + $0x500] sm:$0xff] %vm2463, %v2393
      %2619 = vst [vmem:[%s307 + $0x508] sm:$0xff] %v2394
      %2620 = vst [vmem:[%s307 + $0x510] sm:$0xff] %v2395
      %2621 = vst [vmem:[%s307 + $0x518] sm:$0xff] %v2396
      %2622 = vst [vmem:[%s307 + $0x520] sm:$0xff] %v2397
      %2623 = vst [vmem:[%s307 + $0x528] sm:$0xff] %v2398
      %2624 = vst [vmem:[%s307 + $0x530] sm:$0xff] %v2399
      %2625 = vst.msk [vmem:[%s307 + $0x538] sm:$0xff] %vm2463, %v2400
      %2626 = vst [vmem:[%s307 + $0x540] sm:$0xff] %v2401
      %2627 = vst [vmem:[%s307 + $0x548] sm:$0xff] %v2402
      %2628 = vst [vmem:[%s307 + $0x550] sm:$0xff] %v2403
      %2629 = vst [vmem:[%s307 + $0x558] sm:$0xff] %v2404
      %2630 = vst [vmem:[%s307 + $0x560] sm:$0xff] %v2405
      %2631 = vst [vmem:[%s307 + $0x568] sm:$0xff] %v2406
      %2632 = vst.msk [vmem:[%s307 + $0x570] sm:$0xff] %vm2463, %v2407
      %2633 = vst [vmem:[%s307 + $0x578] sm:$0xff] %v2408
      %2634 = vst [vmem:[%s307 + $0x580] sm:$0xff] %v2409
      %2635 = vst [vmem:[%s307 + $0x588] sm:$0xff] %v2410
      %2636 = vst [vmem:[%s307 + $0x590] sm:$0xff] %v2411
      %2637 = vst [vmem:[%s307 + $0x598] sm:$0xff] %v2412
      %2638 = vst [vmem:[%s307 + $0x5a0] sm:$0xff] %v2413
      %2639 = vst.msk [vmem:[%s307 + $0x5a8] sm:$0xff] %vm2463, %v2414
      %2640 = vst [vmem:[%s307 + $0x5b0] sm:$0xff] %v2415
      %2641 = vst [vmem:[%s307 + $0x5b8] sm:$0xff] %v2416
      %2642 = vst [vmem:[%s307 + $0x5c0] sm:$0xff] %v2417
      %2643 = vst [vmem:[%s307 + $0x5c8] sm:$0xff] %v2418
      %2644 = vst [vmem:[%s307 + $0x5d0] sm:$0xff] %v2419
      %2645 = vst [vmem:[%s307 + $0x5d8] sm:$0xff] %v2420
      %2646 = vst.msk [vmem:[%s307 + $0x5e0] sm:$0xff] %vm2463, %v2421
      %2647 = vst [vmem:[%s307 + $0x5e8] sm:$0xff] %v2422
      %2648 = vst [vmem:[%s307 + $0x5f0] sm:$0xff] %v2423
      %2649 = vst [vmem:[%s307 + $0x5f8] sm:$0xff] %v2424
      %2650 = vst [vmem:[%s307 + $0x600] sm:$0xff] %v2425
      %2651 = vst [vmem:[%s307 + $0x608] sm:$0xff] %v2426
      %2652 = vst [vmem:[%s307 + $0x610] sm:$0xff] %v2427
      %2653 = vst.msk [vmem:[%s307 + $0x618] sm:$0xff] %vm2463, %v2428
      %2654 = vst [vmem:[%s307 + $0x620] sm:$0xff] %v2429
      %2655 = vst [vmem:[%s307 + $0x628] sm:$0xff] %v2430
      %2656 = vst [vmem:[%s307 + $0x630] sm:$0xff] %v2431
      %2657 = vst [vmem:[%s307 + $0x638] sm:$0xff] %v2432
      %2658 = vst [vmem:[%s307 + $0x640] sm:$0xff] %v2433
      %2659 = vst [vmem:[%s307 + $0x648] sm:$0xff] %v2434
      %2660 = vst.msk [vmem:[%s307 + $0x650] sm:$0xff] %vm2463, %v2435
      %2661 = vst [vmem:[%s307 + $0x658] sm:$0xff] %v2436
      %2662 = vst [vmem:[%s307 + $0x660] sm:$0xff] %v2437
      %2663 = vst [vmem:[%s307 + $0x668] sm:$0xff] %v2438
      %2664 = vst [vmem:[%s307 + $0x670] sm:$0xff] %v2439
      %2665 = vst [vmem:[%s307 + $0x678] sm:$0xff] %v2440
      %2666 = vst [vmem:[%s307 + $0x680] sm:$0xff] %v2441
      %2667 = vst.msk [vmem:[%s307 + $0x688] sm:$0xff] %vm2463, %v2442
      %2668 = vst [vmem:[%s307 + $0x690] sm:$0xff] %v2443
      %2669 = vst [vmem:[%s307 + $0x698] sm:$0xff] %v2444
      %2670 = vst [vmem:[%s307 + $0x6a0] sm:$0xff] %v2445
      %2671 = vst [vmem:[%s307 + $0x6a8] sm:$0xff] %v2446
      %2672 = vst [vmem:[%s307 + $0x6b0] sm:$0xff] %v2447
      %2673 = vst [vmem:[%s307 + $0x6b8] sm:$0xff] %v2448
      %2674 = vst.msk [vmem:[%s307 + $0x6c0] sm:$0xff] %vm2463, %v2449
      %2675 = vst [vmem:[%s307 + $0x6c8] sm:$0xff] %v2450
      %2676 = vst [vmem:[%s307 + $0x6d0] sm:$0xff] %v2451
      %2677 = vst [vmem:[%s307 + $0x6d8] sm:$0xff] %v2452
      %2678 = vst [vmem:[%s307 + $0x6e0] sm:$0xff] %v2453
      %2679 = vst [vmem:[%s307 + $0x6e8] sm:$0xff] %v2454
      %2680 = vst [vmem:[%s307 + $0x6f0] sm:$0xff] %v2455
      %2681 = vst.msk [vmem:[%s307 + $0x6f8] sm:$0xff] %vm2463, %v2456
      %s2682 = smul.u32 32, %s20
      %p2683 = scmp.lt.s32.totalorder %s19, 0
      %s2684 = scalar_select %p2683, %s19, 0
      %p2685 = scmp.lt.s32.totalorder %s2682, 127
      %s2686 = scalar_select %p2685, %s2682, 127
      %s2687 = smul.addr %s2686, 7
      %s2688 = smul.addr %s2684, 896
      %s2689 = sadd.s32 %s2687, %s2688
      %s2690 = smul.addr %s2689, 8
      %s2691 = scalar_lea.vmem %s4, %s2690
      // Predicated region
      $region37: #{tpu_custom_call.1} parent=35 // pred_check
        %p2692 = pneg %p153
      $region38: #{tpu_custom_call.1} parent=35 // pred_check_branch
        %2694 = sbr.rel (%p2692) target = $region40
      $region39: #{tpu_custom_call.1} parent=35 // pred_region
        %s2695 = smul.u32 32, %s20
      $region40: #{tpu_custom_call.1} parent=35 // pred_fallthru
        _
    $region36: #{tpu_custom_call.1} parent=5 // pred_fallthru
      _
    %p2696 = scmp.le.s32.totalorder 2, %s10
    // Predicated region
    $region41: #{tpu_custom_call.1} parent=5 // pred_check
      %p2697 = pneg %p2696
    $region42: #{tpu_custom_call.1} parent=5 // pred_check_branch
      %2699 = sbr.rel (%p2697) target = $region44
    $region43: #{tpu_custom_call.1} parent=5 // pred_region
      %s2700 = ssub.s32 %s10, 2
      // Predicated region
      $region45: #{tpu_custom_call.1} parent=43 // pred_check
        %p2701 = pneg %p159
      $region46: #{tpu_custom_call.1} parent=43 // pred_check_branch
        %2703 = sbr.rel (%p2701) target = $region48
      $region47: #{tpu_custom_call.1} parent=43 // pred_region
        %s2704 = smul.u32 32, %s22
        %p2705 = scmp.lt.s32.totalorder %s21, 0
        %s2706 = scalar_select %p2705, %s21, 0
        %p2707 = scmp.lt.s32.totalorder %s2704, 127
        %s2708 = scalar_select %p2707, %s2704, 127
        %s2709 = smul.addr %s2708, 7
        %s2710 = smul.addr %s2706, 896
        %s2711 = sadd.s32 %s2709, %s2710
        %s2712 = smul.addr %s2711, 8
        %s2713 = scalar_lea.vmem %s4, %s2712
      $region48: #{tpu_custom_call.1} parent=43 // pred_fallthru
        _
    $region44: #{tpu_custom_call.1} parent=5 // pred_fallthru
      _
  $region6: #{tpu_custom_call.1} parent=0 // loop_footer
    %s14 = sadd.s32 1, %s10
  $region7: #{tpu_custom_call.1} parent=0 // loop_footer_branch
    %9 = sbr.rel target = $region3
  $region8: #{tpu_custom_call.1} parent=0 // loop_exit
    _

</llo_original>
